<compile_context>
chip_gen: v7x
topology: tpu7x:2x2x1
jax: 0.10.0
libtpu: 0.0.40
codegen_flags: <defaults>
</compile_context>

<pallas_src>
import jax
import jax.numpy as jnp
from jax import lax
from jax.experimental import pallas as pl
from jax.experimental.pallas import tpu as pltpu


def _round_up(n: int, m: int) -> int:
    return ((n + m - 1) // m) * m


_STRIP = 2048                 # batch rows (lanes) per inner-loop strip
_TB_MAX = 16 * 1024           # batch rows per grid step (DMA tile)
_VMEM_LIMIT = 40 * 1024 * 1024  # x blocks ~16 MiB + out ~1 MiB + temps, with headroom


def simple_fc_kernel(x_ref, w1_ref, b1_ref, w2_ref, b2_ref, w3_ref, b3_ref, o_ref):
    # x_ref : (TB, in)  natural layout (batch on sublanes in the VMEM block)
    # o_ref : (out, TB) batch-on-lanes, lane-dense output block
    # Weights arrive in PyTorch (out, in) layout; cast to bf16 once per grid
    # step (hoisted out of the strip loop).  Biases are (out, 1) f32 columns.
    w1 = w1_ref[...].astype(jnp.bfloat16)
    w2 = w2_ref[...].astype(jnp.bfloat16)
    w3 = w3_ref[...].astype(jnp.bfloat16)
    b1 = b1_ref[...]
    b2 = b2_ref[...]
    b3 = b3_ref[...]

    n_strips = x_ref.shape[0] // _STRIP  # static: TB is a multiple of _STRIP

    def strip_body(s, carry):
        r0 = pl.multiple_of(s * _STRIP, _STRIP)

        # (STRIP, in) natural-layout slab.  Layer 1 contracts the feature
        # (minor) axis of BOTH operands (A @ B^T form), so the relayout to
        # batch-on-lanes happens inside the matmul lowering and overlaps the
        # x DMA -- no wrapper-side transpose pass over HBM.
        xb = x_ref[pl.ds(r0, _STRIP), :].astype(jnp.bfloat16)

        # Layer 1: Linear(18 -> 8) + ReLU   -> (8, STRIP), batch on lanes
        h1 = lax.dot_general(
            w1, xb, (((1,), (1,)), ((), ())),
            preferred_element_type=jnp.float32) + b1
        h1 = jnp.maximum(h1, 0.0).astype(jnp.bfloat16)

        # Layer 2: Linear(8 -> 8) + ReLU
        h2 = jnp.dot(w2, h1, preferred_element_type=jnp.float32) + b2
        h2 = jnp.maximum(h2, 0.0).astype(jnp.bfloat16)

        # Layer 3: Linear(8 -> 8), no activation (output_size of the original
        # module is unused; last layer is hidden -> hidden)
        o = jnp.dot(w3, h2, preferred_element_type=jnp.float32) + b3

        o_ref[:, pl.ds(r0, _STRIP)] = o.astype(o_ref.dtype)
        return carry

    lax.fori_loop(0, n_strips, strip_body, 0, unroll=True)


def _simple_fc_t(x, params):
    """Forward pass; returns the result in (out_dim, B) batch-on-lanes layout."""
    w1, b1 = params["w1"], params["b1"]
    w2, b2 = params["w2"], params["b2"]
    w3, b3 = params["w3"], params["b3"]

    B, in_dim = x.shape
    hid = w1.shape[0]
    out_dim = w3.shape[0]

    # Batch tile: multiple of the in-kernel strip; capped by VMEM; shrunk for
    # mid-size batches so the "parallel" grid axis has >= 2 steps (megacore).
    if B >= 2 * _STRIP:
        tb = min(_TB_MAX, _round_up(pl.cdiv(B, 2), _STRIP))
    else:
        tb = _round_up(B, _STRIP)
    grid = (pl.cdiv(B, tb),)  # no batch padding: ragged last block is masked

    # Biases as (out, 1) columns -> single lane-broadcast VPU add.
    b1c = b1.reshape(hid, 1)
    b2c = b2.reshape(hid, 1)
    b3c = b3.reshape(out_dim, 1)

    flops = 2 * B * (in_dim * hid + hid * hid + hid * out_dim)
    bytes_accessed = 4 * (B * (in_dim + out_dim)
                          + in_dim * hid + 2 * hid * hid + 2 * hid + out_dim)

    def resident(shape):  # same block every grid step -> stays VMEM-resident
        return pl.BlockSpec(shape, lambda i: (0, 0))

    return pl.pallas_call(
        simple_fc_kernel,
        out_shape=jax.ShapeDtypeStruct((out_dim, B), x.dtype),
        grid=grid,
        in_specs=[
            pl.BlockSpec((tb, in_dim), lambda i: (i, 0)),   # x: natural layout, pipelined
            resident(w1.shape), resident(b1c.shape),
            resident(w2.shape), resident(b2c.shape),
            resident(w3.shape), resident(b3c.shape),
        ],
        out_specs=pl.BlockSpec((out_dim, tb), lambda i: (0, i)),
        compiler_params=pltpu.CompilerParams(
            dimension_semantics=("parallel",),
            vmem_limit_bytes=_VMEM_LIMIT,
        ),
        cost_estimate=pl.CostEstimate(
            flops=flops, transcendentals=0, bytes_accessed=bytes_accessed),
    )(x, w1, b1c, w2, b2c, w3, b3c)


simple_fc_net_t = jax.jit(_simple_fc_t)


@jax.jit
def simple_fc_net(x, params):
    """PyTorch-compatible forward: (B, in) f32 -> (B, hidden) f32.

    The single (out, B) -> (B, out) transpose is the only remaining layout op;
    consumers that can take features-major output should call simple_fc_net_t
    directly and skip it (review option (c))."""
    return _simple_fc_t(x, params).T


def init_params(key, input_size=18, hidden_units=8):
    """PyTorch Linear default init: U[-1/sqrt(fan_in), +], W stored (out, in)."""
    ks = jax.random.split(key, 6)

    def linear(kw, kb, fan_in, fan_out):
        bound = 1.0 / (fan_in ** 0.5)
        w = jax.random.uniform(kw, (fan_out, fan_in), jnp.float32, -bound, bound)
        b = jax.random.uniform(kb, (fan_out,), jnp.float32, -bound, bound)
        return w, b

    w1, b1 = linear(ks[0], ks[1], input_size, hidden_units)
    w2, b2 = linear(ks[2], ks[3], hidden_units, hidden_units)
    w3, b3 = linear(ks[4], ks[5], hidden_units, hidden_units)
    return {"w1": w1, "b1": b1, "w2": w2, "b2": b2, "w3": w3, "b3": b3}


if __name__ == "__main__":
    key = jax.random.PRNGKey(0)
    k_params, k_x = jax.random.split(key)

    input_size, hidden_units = 18, 8
    params = init_params(k_params, input_size, hidden_units)

    bf = jnp.bfloat16

    def ref_f32(x):  # PyTorch semantics: y = x @ W.T + b
        h = jnp.maximum(x @ params["w1"].T + params["b1"], 0.0)
        h = jnp.maximum(h @ params["w2"].T + params["b2"], 0.0)
        return h @ params["w3"].T + params["b3"]

    def ref_bf16(x):  # mirrors the kernel's bf16-operand / f32-accumulate math
        def lin(h, w, b):
            return jnp.dot(h.astype(bf), w.astype(bf).T,
                           preferred_element_type=jnp.float32) + b
        h = jnp.maximum(lin(x, params["w1"], params["b1"]), 0.0)
        h = jnp.maximum(lin(h, params["w2"], params["b2"]), 0.0)
        return lin(h, params["w3"], params["b3"])

    # Primary small case plus the review-requested coverage: non-multiple-of-128
    # batch and multi-tile batch with a ragged last block.
    for batch in (8, 300, 33000):
        xk = jax.random.fold_in(k_x, batch)
        x = jax.random.normal(xk, (batch, input_size), jnp.float32)
        out = jax.block_until_ready(simple_fc_net(x, params))
        assert out.shape == (batch, hidden_units)
        # Tight check against a reference with identical bf16 quantisation.
        assert jnp.allclose(out, ref_bf16(x), atol=2e-4, rtol=2e-4)
        if batch == 8:
            # Loose PyTorch-semantics sanity check (bf16 matmul operands).
            assert jnp.allclose(out, ref_f32(x), atol=5e-2, rtol=5e-2)

    print("KERNEL_OK")
</pallas_src>

<mosaic_0001>
module attributes {stable_mosaic.version = 11 : i64} {
  func.func @simple_fc_kernel(%arg0: i32, %arg1: memref<2048x18xf32, #tpu.memory_space<vmem>>, %arg2: memref<8x18xf32, #tpu.memory_space<vmem>>, %arg3: memref<8x1xf32, #tpu.memory_space<vmem>>, %arg4: memref<8x8xf32, #tpu.memory_space<vmem>>, %arg5: memref<8x1xf32, #tpu.memory_space<vmem>>, %arg6: memref<8x8xf32, #tpu.memory_space<vmem>>, %arg7: memref<8x1xf32, #tpu.memory_space<vmem>>, %arg8: memref<8x2048xf32, #tpu.memory_space<vmem>>) attributes {dimension_semantics = [#tpu.dimension_semantics<parallel>], iteration_bounds = array<i64: 1>, scalar_prefetch = 0 : i64, scratch_operands = 0 : i64, tpu.core_type = #tpu.core_type<tc>, window_params = [{transform_indices = @transform_0, window_bounds = array<i64: 2048, 18>}, {pipeline_mode = #tpu.pipeline_mode<synchronous>, transform_indices = @transform_1, window_bounds = array<i64: 8, 18>}, {pipeline_mode = #tpu.pipeline_mode<synchronous>, transform_indices = @transform_2, window_bounds = array<i64: 8, 1>}, {pipeline_mode = #tpu.pipeline_mode<synchronous>, transform_indices = @transform_3, window_bounds = array<i64: 8, 8>}, {pipeline_mode = #tpu.pipeline_mode<synchronous>, transform_indices = @transform_4, window_bounds = array<i64: 8, 1>}, {pipeline_mode = #tpu.pipeline_mode<synchronous>, transform_indices = @transform_5, window_bounds = array<i64: 8, 8>}, {pipeline_mode = #tpu.pipeline_mode<synchronous>, transform_indices = @transform_6, window_bounds = array<i64: 8, 1>}, {transform_indices = @transform_7, window_bounds = array<i64: 8, 2048>}]} {
    %c0 = arith.constant 0 : index
    %c0_0 = arith.constant 0 : index
    %0 = vector.load %arg2[%c0, %c0_0] : memref<8x18xf32, #tpu.memory_space<vmem>>, vector<8x18xf32>
    %1 = arith.truncf %0 : vector<8x18xf32> to vector<8x18xbf16>
    %c0_1 = arith.constant 0 : index
    %c0_2 = arith.constant 0 : index
    %2 = vector.load %arg4[%c0_1, %c0_2] : memref<8x8xf32, #tpu.memory_space<vmem>>, vector<8x8xf32>
    %3 = arith.truncf %2 : vector<8x8xf32> to vector<8x8xbf16>
    %c0_3 = arith.constant 0 : index
    %c0_4 = arith.constant 0 : index
    %4 = vector.load %arg6[%c0_3, %c0_4] : memref<8x8xf32, #tpu.memory_space<vmem>>, vector<8x8xf32>
    %5 = arith.truncf %4 : vector<8x8xf32> to vector<8x8xbf16>
    %c0_5 = arith.constant 0 : index
    %c0_6 = arith.constant 0 : index
    %6 = vector.load %arg3[%c0_5, %c0_6] : memref<8x1xf32, #tpu.memory_space<vmem>>, vector<8x1xf32>
    %c0_7 = arith.constant 0 : index
    %c0_8 = arith.constant 0 : index
    %7 = vector.load %arg5[%c0_7, %c0_8] : memref<8x1xf32, #tpu.memory_space<vmem>>, vector<8x1xf32>
    %c0_9 = arith.constant 0 : index
    %c0_10 = arith.constant 0 : index
    %8 = vector.load %arg7[%c0_9, %c0_10] : memref<8x1xf32, #tpu.memory_space<vmem>>, vector<8x1xf32>
    %c0_i32 = arith.constant 0 : i32
    %c2048_i32 = arith.constant 2048 : i32
    %9 = arith.muli %c0_i32, %c2048_i32 : i32
    %10 = tpu.assume_multiple %9, 2048 : i32
    %11 = arith.index_cast %10 : i32 to index
    %c0_11 = arith.constant 0 : index
    %12 = vector.load %arg1[%11, %c0_11] : memref<2048x18xf32, #tpu.memory_space<vmem>>, vector<2048x18xf32>
    %13 = arith.truncf %12 : vector<2048x18xf32> to vector<2048x18xbf16>
    %cst = arith.constant dense<0.000000e+00> : vector<8x2048xf32>
    %14 = tpu.matmul %1, %13, %cst {dimension_numbers = #tpu.dot_dimension_numbers<[1], [1], [0], [0], [0, 0, 1, 0], [], []>} : vector<8x18xbf16>, vector<2048x18xbf16>, vector<8x2048xf32> -> vector<8x2048xf32>
    %15 = vector.broadcast %6 : vector<8x1xf32> to vector<8x2048xf32>
    %16 = arith.addf %14, %15 : vector<8x2048xf32>
    %cst_12 = arith.constant 0.000000e+00 : f32
    %17 = vector.broadcast %cst_12 : f32 to vector<8x2048xf32>
    %18 = arith.maximumf %16, %17 : vector<8x2048xf32>
    %19 = arith.truncf %18 : vector<8x2048xf32> to vector<8x2048xbf16>
    %cst_13 = arith.constant dense<0.000000e+00> : vector<8x2048xf32>
    %20 = tpu.matmul %3, %19, %cst_13 {dimension_numbers = #tpu.dot_dimension_numbers<[1], [0], [0], [1], [0, 0, 1, 1], [], []>} : vector<8x8xbf16>, vector<8x2048xbf16>, vector<8x2048xf32> -> vector<8x2048xf32>
    %21 = vector.broadcast %7 : vector<8x1xf32> to vector<8x2048xf32>
    %22 = arith.addf %20, %21 : vector<8x2048xf32>
    %cst_14 = arith.constant 0.000000e+00 : f32
    %23 = vector.broadcast %cst_14 : f32 to vector<8x2048xf32>
    %24 = arith.maximumf %22, %23 : vector<8x2048xf32>
    %25 = arith.truncf %24 : vector<8x2048xf32> to vector<8x2048xbf16>
    %cst_15 = arith.constant dense<0.000000e+00> : vector<8x2048xf32>
    %26 = tpu.matmul %5, %25, %cst_15 {dimension_numbers = #tpu.dot_dimension_numbers<[1], [0], [0], [1], [0, 0, 1, 1], [], []>} : vector<8x8xbf16>, vector<8x2048xbf16>, vector<8x2048xf32> -> vector<8x2048xf32>
    %27 = vector.broadcast %8 : vector<8x1xf32> to vector<8x2048xf32>
    %28 = arith.addf %26, %27 : vector<8x2048xf32>
    %c0_16 = arith.constant 0 : index
    %29 = arith.index_cast %10 : i32 to index
    %30 = vector.load %arg8[%c0_16, %29] : memref<8x2048xf32, #tpu.memory_space<vmem>>, vector<8x2048xf32>
    tpu.vector_store %arg8[%c0_16, %29], %28 {strides = array<i32>} : memref<8x2048xf32, #tpu.memory_space<vmem>>, vector<8x2048xf32>,
    %c1_i32 = arith.constant 1 : i32
    return
  }
  func.func @transform_0(%arg0: i32) -> (i32, i32) {
    %c0_i32 = arith.constant 0 : i32
    %c0_i32_0 = arith.constant 0 : i32
    return %arg0, %c0_i32 : i32, i32
  }
  func.func @transform_1(%arg0: i32) -> (i32, i32) {
    %c0_i32 = arith.constant 0 : i32
    %c0_i32_0 = arith.constant 0 : i32
    %c0_i32_1 = arith.constant 0 : i32
    return %c0_i32, %c0_i32_0 : i32, i32
  }
  func.func @transform_2(%arg0: i32) -> (i32, i32) {
    %c0_i32 = arith.constant 0 : i32
    %c0_i32_0 = arith.constant 0 : i32
    %c0_i32_1 = arith.constant 0 : i32
    return %c0_i32, %c0_i32_0 : i32, i32
  }
  func.func @transform_3(%arg0: i32) -> (i32, i32) {
    %c0_i32 = arith.constant 0 : i32
    %c0_i32_0 = arith.constant 0 : i32
    %c0_i32_1 = arith.constant 0 : i32
    return %c0_i32, %c0_i32_0 : i32, i32
  }
  func.func @transform_4(%arg0: i32) -> (i32, i32) {
    %c0_i32 = arith.constant 0 : i32
    %c0_i32_0 = arith.constant 0 : i32
    %c0_i32_1 = arith.constant 0 : i32
    return %c0_i32, %c0_i32_0 : i32, i32
  }
  func.func @transform_5(%arg0: i32) -> (i32, i32) {
    %c0_i32 = arith.constant 0 : i32
    %c0_i32_0 = arith.constant 0 : i32
    %c0_i32_1 = arith.constant 0 : i32
    return %c0_i32, %c0_i32_0 : i32, i32
  }
  func.func @transform_6(%arg0: i32) -> (i32, i32) {
    %c0_i32 = arith.constant 0 : i32
    %c0_i32_0 = arith.constant 0 : i32
    %c0_i32_1 = arith.constant 0 : i32
    return %c0_i32, %c0_i32_0 : i32, i32
  }
  func.func @transform_7(%arg0: i32) -> (i32, i32) {
    %c0_i32 = arith.constant 0 : i32
    %c0_i32_0 = arith.constant 0 : i32
    return %c0_i32, %arg0 : i32, i32
  }
}

</mosaic_0001>

<llo_original>
// kernel: simple_fc_net.1
$region0: #{simple_fc_net.1}
  #allocation0 [shape = 'u32[]', space=smem, size = 0x4, offset = 0x4, fixed_abs, tag = 'smem constant byte address 0x4 - core index']
  #allocation1 [shape = 'u32[144,128]{1,0:T(1,128)}', space=vmem, size = 0x12000, scoped, tag = 'internal scratch']
  %s0 = inlined_call_operand.vmem [shape: f32[8,18], index: 0, kind: input, shape index: {}]
  %s1 = inlined_call_operand.vmem [shape: f32[8,18], index: 1, kind: input, shape index: {}]
  %s2 = inlined_call_operand.vmem [shape: f32[8,1], index: 2, kind: input, shape index: {}]
  %s3 = inlined_call_operand.vmem [shape: f32[8,8], index: 3, kind: input, shape index: {}]
  %s4 = inlined_call_operand.vmem [shape: f32[8,1], index: 4, kind: input, shape index: {}]
  %s5 = inlined_call_operand.vmem [shape: f32[8,8], index: 5, kind: input, shape index: {}]
  %s6 = inlined_call_operand.vmem [shape: f32[8,1], index: 6, kind: input, shape index: {}]
  %s7 = inlined_call_operand.vmem [shape: f32[8,8], index: 7, kind: output, shape index: {}]
  %s8 = sld [smem:[#allocation0]]
  $region72: #{simple_fc_net.1} parent=0
    _
  %s10 = ssub.s32 1, %s8
  %s11 = scalar_select 0, %s10, %s8
  $region1: #{simple_fc_net.1} parent=0
    #allocation2 [shape = 'u8[65536]{0}', space=vmem, size = 0x10000, scoped, tag = 'output window, operand 0, single buffered']
    // Predicated region
    $region2: #{simple_fc_net.1} parent=1 // pred_check
      _
    $region3: #{simple_fc_net.1} parent=1 // pred_check_branch
      %13 = sbr.rel (0) target = $region5
    $region4: #{simple_fc_net.1} parent=1 // pred_region
      _
    $region5: #{simple_fc_net.1} parent=1 // pred_fallthru
      _
    // Predicated region
    $region6: #{simple_fc_net.1} parent=1 // pred_check
      _
    $region7: #{simple_fc_net.1} parent=1 // pred_check_branch
      %15 = sbr.rel (0) target = $region9
    $region8: #{simple_fc_net.1} parent=1 // pred_region
      _
    $region9: #{simple_fc_net.1} parent=1 // pred_fallthru
      _
    // Predicated region
    $region10: #{simple_fc_net.1} parent=1 // pred_check
      _
    $region11: #{simple_fc_net.1} parent=1 // pred_check_branch
      %17 = sbr.rel (0) target = $region13
    $region12: #{simple_fc_net.1} parent=1 // pred_region
      _
    $region13: #{simple_fc_net.1} parent=1 // pred_fallthru
      _
    // Predicated region
    $region14: #{simple_fc_net.1} parent=1 // pred_check
      _
    $region15: #{simple_fc_net.1} parent=1 // pred_check_branch
      %19 = sbr.rel (0) target = $region17
    $region16: #{simple_fc_net.1} parent=1 // pred_region
      _
    $region17: #{simple_fc_net.1} parent=1 // pred_fallthru
      _
    // Predicated region
    $region18: #{simple_fc_net.1} parent=1 // pred_check
      _
    $region19: #{simple_fc_net.1} parent=1 // pred_check_branch
      %21 = sbr.rel (0) target = $region21
    $region20: #{simple_fc_net.1} parent=1 // pred_region
      _
    $region21: #{simple_fc_net.1} parent=1 // pred_fallthru
      _
    // Predicated region
    $region22: #{simple_fc_net.1} parent=1 // pred_check
      _
    $region23: #{simple_fc_net.1} parent=1 // pred_check_branch
      %23 = sbr.rel (0) target = $region25
    $region24: #{simple_fc_net.1} parent=1 // pred_region
      _
    $region25: #{simple_fc_net.1} parent=1 // pred_fallthru
      _
    // Predicated region
    $region26: #{simple_fc_net.1} parent=1 // pred_check
      _
    $region27: #{simple_fc_net.1} parent=1 // pred_check_branch
      %25 = sbr.rel (0) target = $region29
    $region28: #{simple_fc_net.1} parent=1 // pred_region
      _
    $region29: #{simple_fc_net.1} parent=1 // pred_fallthru
      _
    %v27 = vld [vmem:[%s1] sm:$0xff]
    %v28 = vpack.c.bf16 %v27, %v27
    %v29 = vld [vmem:[%s3] sm:$0xff]
    %v30 = vpack.c.bf16 %v29, %v29
    %v31 = vld [vmem:[%s5] sm:$0xff]
    %v32 = vpack.c.bf16 %v31, %v31
    %v33 = vld [vmem:[%s2] sm:$0xff]
    %v34 = vld [vmem:[%s4] sm:$0xff]
    %v35 = vld [vmem:[%s6] sm:$0xff]
    %v36 = vld [vmem:[%s0] sm:$0xff]
    %v37 = vld [vmem:[%s0 + $0x8] sm:$0xff]
    %v38 = vld [vmem:[%s0 + $0x10] sm:$0xff]
    %v39 = vld [vmem:[%s0 + $0x18] sm:$0xff]
    %v40 = vld [vmem:[%s0 + $0x20] sm:$0xff]
    %v41 = vld [vmem:[%s0 + $0x28] sm:$0xff]
    %v42 = vld [vmem:[%s0 + $0x30] sm:$0xff]
    %v43 = vld [vmem:[%s0 + $0x38] sm:$0xff]
    %v44 = vld [vmem:[%s0 + $0x40] sm:$0xff]
    %v45 = vld [vmem:[%s0 + $0x48] sm:$0xff]
    %v46 = vld [vmem:[%s0 + $0x50] sm:$0xff]
    %v47 = vld [vmem:[%s0 + $0x58] sm:$0xff]
    %v48 = vld [vmem:[%s0 + $0x60] sm:$0xff]
    %v49 = vld [vmem:[%s0 + $0x68] sm:$0xff]
    %v50 = vld [vmem:[%s0 + $0x70] sm:$0xff]
    %v51 = vld [vmem:[%s0 + $0x78] sm:$0xff]
    %v52 = vld [vmem:[%s0 + $0x80] sm:$0xff]
    %v53 = vld [vmem:[%s0 + $0x88] sm:$0xff]
    %v54 = vld [vmem:[%s0 + $0x90] sm:$0xff]
    %v55 = vld [vmem:[%s0 + $0x98] sm:$0xff]
    %v56 = vld [vmem:[%s0 + $0xa0] sm:$0xff]
    %v57 = vld [vmem:[%s0 + $0xa8] sm:$0xff]
    %v58 = vld [vmem:[%s0 + $0xb0] sm:$0xff]
    %v59 = vld [vmem:[%s0 + $0xb8] sm:$0xff]
    %v60 = vld [vmem:[%s0 + $0xc0] sm:$0xff]
    %v61 = vld [vmem:[%s0 + $0xc8] sm:$0xff]
    %v62 = vld [vmem:[%s0 + $0xd0] sm:$0xff]
    %v63 = vld [vmem:[%s0 + $0xd8] sm:$0xff]
    %v64 = vld [vmem:[%s0 + $0xe0] sm:$0xff]
    %v65 = vld [vmem:[%s0 + $0xe8] sm:$0xff]
    %v66 = vld [vmem:[%s0 + $0xf0] sm:$0xff]
    %v67 = vld [vmem:[%s0 + $0xf8] sm:$0xff]
    %v68 = vld [vmem:[%s0 + $0x100] sm:$0xff]
    %v69 = vld [vmem:[%s0 + $0x108] sm:$0xff]
    %v70 = vld [vmem:[%s0 + $0x110] sm:$0xff]
    %v71 = vld [vmem:[%s0 + $0x118] sm:$0xff]
    %v72 = vld [vmem:[%s0 + $0x120] sm:$0xff]
    %v73 = vld [vmem:[%s0 + $0x128] sm:$0xff]
    %v74 = vld [vmem:[%s0 + $0x130] sm:$0xff]
    %v75 = vld [vmem:[%s0 + $0x138] sm:$0xff]
    %v76 = vld [vmem:[%s0 + $0x140] sm:$0xff]
    %v77 = vld [vmem:[%s0 + $0x148] sm:$0xff]
    %v78 = vld [vmem:[%s0 + $0x150] sm:$0xff]
    %v79 = vld [vmem:[%s0 + $0x158] sm:$0xff]
    %v80 = vld [vmem:[%s0 + $0x160] sm:$0xff]
    %v81 = vld [vmem:[%s0 + $0x168] sm:$0xff]
    %v82 = vld [vmem:[%s0 + $0x170] sm:$0xff]
    %v83 = vld [vmem:[%s0 + $0x178] sm:$0xff]
    %v84 = vld [vmem:[%s0 + $0x180] sm:$0xff]
    %v85 = vld [vmem:[%s0 + $0x188] sm:$0xff]
    %v86 = vld [vmem:[%s0 + $0x190] sm:$0xff]
    %v87 = vld [vmem:[%s0 + $0x198] sm:$0xff]
    %v88 = vld [vmem:[%s0 + $0x1a0] sm:$0xff]
    %v89 = vld [vmem:[%s0 + $0x1a8] sm:$0xff]
    %v90 = vld [vmem:[%s0 + $0x1b0] sm:$0xff]
    %v91 = vld [vmem:[%s0 + $0x1b8] sm:$0xff]
    %v92 = vld [vmem:[%s0 + $0x1c0] sm:$0xff]
    %v93 = vld [vmem:[%s0 + $0x1c8] sm:$0xff]
    %v94 = vld [vmem:[%s0 + $0x1d0] sm:$0xff]
    %v95 = vld [vmem:[%s0 + $0x1d8] sm:$0xff]
    %v96 = vld [vmem:[%s0 + $0x1e0] sm:$0xff]
    %v97 = vld [vmem:[%s0 + $0x1e8] sm:$0xff]
    %v98 = vld [vmem:[%s0 + $0x1f0] sm:$0xff]
    %v99 = vld [vmem:[%s0 + $0x1f8] sm:$0xff]
    %v100 = vld [vmem:[%s0 + $0x200] sm:$0xff]
    %v101 = vld [vmem:[%s0 + $0x208] sm:$0xff]
    %v102 = vld [vmem:[%s0 + $0x210] sm:$0xff]
    %v103 = vld [vmem:[%s0 + $0x218] sm:$0xff]
    %v104 = vld [vmem:[%s0 + $0x220] sm:$0xff]
    %v105 = vld [vmem:[%s0 + $0x228] sm:$0xff]
    %v106 = vld [vmem:[%s0 + $0x230] sm:$0xff]
    %v107 = vld [vmem:[%s0 + $0x238] sm:$0xff]
    %v108 = vld [vmem:[%s0 + $0x240] sm:$0xff]
    %v109 = vld [vmem:[%s0 + $0x248] sm:$0xff]
    %v110 = vld [vmem:[%s0 + $0x250] sm:$0xff]
    %v111 = vld [vmem:[%s0 + $0x258] sm:$0xff]
    %v112 = vld [vmem:[%s0 + $0x260] sm:$0xff]
    %v113 = vld [vmem:[%s0 + $0x268] sm:$0xff]
    %v114 = vld [vmem:[%s0 + $0x270] sm:$0xff]
    %v115 = vld [vmem:[%s0 + $0x278] sm:$0xff]
    %v116 = vld [vmem:[%s0 + $0x280] sm:$0xff]
    %v117 = vld [vmem:[%s0 + $0x288] sm:$0xff]
    %v118 = vld [vmem:[%s0 + $0x290] sm:$0xff]
    %v119 = vld [vmem:[%s0 + $0x298] sm:$0xff]
    %v120 = vld [vmem:[%s0 + $0x2a0] sm:$0xff]
    %v121 = vld [vmem:[%s0 + $0x2a8] sm:$0xff]
    %v122 = vld [vmem:[%s0 + $0x2b0] sm:$0xff]
    %v123 = vld [vmem:[%s0 + $0x2b8] sm:$0xff]
    %v124 = vld [vmem:[%s0 + $0x2c0] sm:$0xff]
    %v125 = vld [vmem:[%s0 + $0x2c8] sm:$0xff]
    %v126 = vld [vmem:[%s0 + $0x2d0] sm:$0xff]
    %v127 = vld [vmem:[%s0 + $0x2d8] sm:$0xff]
    %v128 = vld [vmem:[%s0 + $0x2e0] sm:$0xff]
    %v129 = vld [vmem:[%s0 + $0x2e8] sm:$0xff]
    %v130 = vld [vmem:[%s0 + $0x2f0] sm:$0xff]
    %v131 = vld [vmem:[%s0 + $0x2f8] sm:$0xff]
    %v132 = vld [vmem:[%s0 + $0x300] sm:$0xff]
    %v133 = vld [vmem:[%s0 + $0x308] sm:$0xff]
    %v134 = vld [vmem:[%s0 + $0x310] sm:$0xff]
    %v135 = vld [vmem:[%s0 + $0x318] sm:$0xff]
    %v136 = vld [vmem:[%s0 + $0x320] sm:$0xff]
    %v137 = vld [vmem:[%s0 + $0x328] sm:$0xff]
    %v138 = vld [vmem:[%s0 + $0x330] sm:$0xff]
    %v139 = vld [vmem:[%s0 + $0x338] sm:$0xff]
    %v140 = vld [vmem:[%s0 + $0x340] sm:$0xff]
    %v141 = vld [vmem:[%s0 + $0x348] sm:$0xff]
    %v142 = vld [vmem:[%s0 + $0x350] sm:$0xff]
    %v143 = vld [vmem:[%s0 + $0x358] sm:$0xff]
    %v144 = vld [vmem:[%s0 + $0x360] sm:$0xff]
    %v145 = vld [vmem:[%s0 + $0x368] sm:$0xff]
    %v146 = vld [vmem:[%s0 + $0x370] sm:$0xff]
    %v147 = vld [vmem:[%s0 + $0x378] sm:$0xff]
    %v148 = vld [vmem:[%s0 + $0x380] sm:$0xff]
    %v149 = vld [vmem:[%s0 + $0x388] sm:$0xff]
    %v150 = vld [vmem:[%s0 + $0x390] sm:$0xff]
    %v151 = vld [vmem:[%s0 + $0x398] sm:$0xff]
    %v152 = vld [vmem:[%s0 + $0x3a0] sm:$0xff]
    %v153 = vld [vmem:[%s0 + $0x3a8] sm:$0xff]
    %v154 = vld [vmem:[%s0 + $0x3b0] sm:$0xff]
    %v155 = vld [vmem:[%s0 + $0x3b8] sm:$0xff]
    %v156 = vld [vmem:[%s0 + $0x3c0] sm:$0xff]
    %v157 = vld [vmem:[%s0 + $0x3c8] sm:$0xff]
    %v158 = vld [vmem:[%s0 + $0x3d0] sm:$0xff]
    %v159 = vld [vmem:[%s0 + $0x3d8] sm:$0xff]
    %v160 = vld [vmem:[%s0 + $0x3e0] sm:$0xff]
    %v161 = vld [vmem:[%s0 + $0x3e8] sm:$0xff]
    %v162 = vld [vmem:[%s0 + $0x3f0] sm:$0xff]
    %v163 = vld [vmem:[%s0 + $0x3f8] sm:$0xff]
    %v164 = vld [vmem:[%s0 + $0x400] sm:$0xff]
    %v165 = vld [vmem:[%s0 + $0x408] sm:$0xff]
    %v166 = vld [vmem:[%s0 + $0x410] sm:$0xff]
    %v167 = vld [vmem:[%s0 + $0x418] sm:$0xff]
    %v168 = vld [vmem:[%s0 + $0x420] sm:$0xff]
    %v169 = vld [vmem:[%s0 + $0x428] sm:$0xff]
    %v170 = vld [vmem:[%s0 + $0x430] sm:$0xff]
    %v171 = vld [vmem:[%s0 + $0x438] sm:$0xff]
    %v172 = vld [vmem:[%s0 + $0x440] sm:$0xff]
    %v173 = vld [vmem:[%s0 + $0x448] sm:$0xff]
    %v174 = vld [vmem:[%s0 + $0x450] sm:$0xff]
    %v175 = vld [vmem:[%s0 + $0x458] sm:$0xff]
    %v176 = vld [vmem:[%s0 + $0x460] sm:$0xff]
    %v177 = vld [vmem:[%s0 + $0x468] sm:$0xff]
    %v178 = vld [vmem:[%s0 + $0x470] sm:$0xff]
    %v179 = vld [vmem:[%s0 + $0x478] sm:$0xff]
    %v180 = vld [vmem:[%s0 + $0x480] sm:$0xff]
    %v181 = vld [vmem:[%s0 + $0x488] sm:$0xff]
    %v182 = vld [vmem:[%s0 + $0x490] sm:$0xff]
    %v183 = vld [vmem:[%s0 + $0x498] sm:$0xff]
    %v184 = vld [vmem:[%s0 + $0x4a0] sm:$0xff]
    %v185 = vld [vmem:[%s0 + $0x4a8] sm:$0xff]
    %v186 = vld [vmem:[%s0 + $0x4b0] sm:$0xff]
    %v187 = vld [vmem:[%s0 + $0x4b8] sm:$0xff]
    %v188 = vld [vmem:[%s0 + $0x4c0] sm:$0xff]
    %v189 = vld [vmem:[%s0 + $0x4c8] sm:$0xff]
    %v190 = vld [vmem:[%s0 + $0x4d0] sm:$0xff]
    %v191 = vld [vmem:[%s0 + $0x4d8] sm:$0xff]
    %v192 = vld [vmem:[%s0 + $0x4e0] sm:$0xff]
    %v193 = vld [vmem:[%s0 + $0x4e8] sm:$0xff]
    %v194 = vld [vmem:[%s0 + $0x4f0] sm:$0xff]
    %v195 = vld [vmem:[%s0 + $0x4f8] sm:$0xff]
    %v196 = vld [vmem:[%s0 + $0x500] sm:$0xff]
    %v197 = vld [vmem:[%s0 + $0x508] sm:$0xff]
    %v198 = vld [vmem:[%s0 + $0x510] sm:$0xff]
    %v199 = vld [vmem:[%s0 + $0x518] sm:$0xff]
    %v200 = vld [vmem:[%s0 + $0x520] sm:$0xff]
    %v201 = vld [vmem:[%s0 + $0x528] sm:$0xff]
    %v202 = vld [vmem:[%s0 + $0x530] sm:$0xff]
    %v203 = vld [vmem:[%s0 + $0x538] sm:$0xff]
    %v204 = vld [vmem:[%s0 + $0x540] sm:$0xff]
    %v205 = vld [vmem:[%s0 + $0x548] sm:$0xff]
    %v206 = vld [vmem:[%s0 + $0x550] sm:$0xff]
    %v207 = vld [vmem:[%s0 + $0x558] sm:$0xff]
    %v208 = vld [vmem:[%s0 + $0x560] sm:$0xff]
    %v209 = vld [vmem:[%s0 + $0x568] sm:$0xff]
    %v210 = vld [vmem:[%s0 + $0x570] sm:$0xff]
    %v211 = vld [vmem:[%s0 + $0x578] sm:$0xff]
    %v212 = vld [vmem:[%s0 + $0x580] sm:$0xff]
    %v213 = vld [vmem:[%s0 + $0x588] sm:$0xff]
    %v214 = vld [vmem:[%s0 + $0x590] sm:$0xff]
    %v215 = vld [vmem:[%s0 + $0x598] sm:$0xff]
    %v216 = vld [vmem:[%s0 + $0x5a0] sm:$0xff]
    %v217 = vld [vmem:[%s0 + $0x5a8] sm:$0xff]
    %v218 = vld [vmem:[%s0 + $0x5b0] sm:$0xff]
    %v219 = vld [vmem:[%s0 + $0x5b8] sm:$0xff]
    %v220 = vld [vmem:[%s0 + $0x5c0] sm:$0xff]
    %v221 = vld [vmem:[%s0 + $0x5c8] sm:$0xff]
    %v222 = vld [vmem:[%s0 + $0x5d0] sm:$0xff]
    %v223 = vld [vmem:[%s0 + $0x5d8] sm:$0xff]
    %v224 = vld [vmem:[%s0 + $0x5e0] sm:$0xff]
    %v225 = vld [vmem:[%s0 + $0x5e8] sm:$0xff]
    %v226 = vld [vmem:[%s0 + $0x5f0] sm:$0xff]
    %v227 = vld [vmem:[%s0 + $0x5f8] sm:$0xff]
    %v228 = vld [vmem:[%s0 + $0x600] sm:$0xff]
    %v229 = vld [vmem:[%s0 + $0x608] sm:$0xff]
    %v230 = vld [vmem:[%s0 + $0x610] sm:$0xff]
    %v231 = vld [vmem:[%s0 + $0x618] sm:$0xff]
    %v232 = vld [vmem:[%s0 + $0x620] sm:$0xff]
    %v233 = vld [vmem:[%s0 + $0x628] sm:$0xff]
    %v234 = vld [vmem:[%s0 + $0x630] sm:$0xff]
    %v235 = vld [vmem:[%s0 + $0x638] sm:$0xff]
    %v236 = vld [vmem:[%s0 + $0x640] sm:$0xff]
    %v237 = vld [vmem:[%s0 + $0x648] sm:$0xff]
    %v238 = vld [vmem:[%s0 + $0x650] sm:$0xff]
    %v239 = vld [vmem:[%s0 + $0x658] sm:$0xff]
    %v240 = vld [vmem:[%s0 + $0x660] sm:$0xff]
    %v241 = vld [vmem:[%s0 + $0x668] sm:$0xff]
    %v242 = vld [vmem:[%s0 + $0x670] sm:$0xff]
    %v243 = vld [vmem:[%s0 + $0x678] sm:$0xff]
    %v244 = vld [vmem:[%s0 + $0x680] sm:$0xff]
    %v245 = vld [vmem:[%s0 + $0x688] sm:$0xff]
    %v246 = vld [vmem:[%s0 + $0x690] sm:$0xff]
    %v247 = vld [vmem:[%s0 + $0x698] sm:$0xff]
    %v248 = vld [vmem:[%s0 + $0x6a0] sm:$0xff]
    %v249 = vld [vmem:[%s0 + $0x6a8] sm:$0xff]
    %v250 = vld [vmem:[%s0 + $0x6b0] sm:$0xff]
    %v251 = vld [vmem:[%s0 + $0x6b8] sm:$0xff]
    %v252 = vld [vmem:[%s0 + $0x6c0] sm:$0xff]
    %v253 = vld [vmem:[%s0 + $0x6c8] sm:$0xff]
    %v254 = vld [vmem:[%s0 + $0x6d0] sm:$0xff]
    %v255 = vld [vmem:[%s0 + $0x6d8] sm:$0xff]
    %v256 = vld [vmem:[%s0 + $0x6e0] sm:$0xff]
    %v257 = vld [vmem:[%s0 + $0x6e8] sm:$0xff]
    %v258 = vld [vmem:[%s0 + $0x6f0] sm:$0xff]
    %v259 = vld [vmem:[%s0 + $0x6f8] sm:$0xff]
    %v260 = vld [vmem:[%s0 + $0x700] sm:$0xff]
    %v261 = vld [vmem:[%s0 + $0x708] sm:$0xff]
    %v262 = vld [vmem:[%s0 + $0x710] sm:$0xff]
    %v263 = vld [vmem:[%s0 + $0x718] sm:$0xff]
    %v264 = vld [vmem:[%s0 + $0x720] sm:$0xff]
    %v265 = vld [vmem:[%s0 + $0x728] sm:$0xff]
    %v266 = vld [vmem:[%s0 + $0x730] sm:$0xff]
    %v267 = vld [vmem:[%s0 + $0x738] sm:$0xff]
    %v268 = vld [vmem:[%s0 + $0x740] sm:$0xff]
    %v269 = vld [vmem:[%s0 + $0x748] sm:$0xff]
    %v270 = vld [vmem:[%s0 + $0x750] sm:$0xff]
    %v271 = vld [vmem:[%s0 + $0x758] sm:$0xff]
    %v272 = vld [vmem:[%s0 + $0x760] sm:$0xff]
    %v273 = vld [vmem:[%s0 + $0x768] sm:$0xff]
    %v274 = vld [vmem:[%s0 + $0x770] sm:$0xff]
    %v275 = vld [vmem:[%s0 + $0x778] sm:$0xff]
    %v276 = vld [vmem:[%s0 + $0x780] sm:$0xff]
    %v277 = vld [vmem:[%s0 + $0x788] sm:$0xff]
    %v278 = vld [vmem:[%s0 + $0x790] sm:$0xff]
    %v279 = vld [vmem:[%s0 + $0x798] sm:$0xff]
    %v280 = vld [vmem:[%s0 + $0x7a0] sm:$0xff]
    %v281 = vld [vmem:[%s0 + $0x7a8] sm:$0xff]
    %v282 = vld [vmem:[%s0 + $0x7b0] sm:$0xff]
    %v283 = vld [vmem:[%s0 + $0x7b8] sm:$0xff]
    %v284 = vld [vmem:[%s0 + $0x7c0] sm:$0xff]
    %v285 = vld [vmem:[%s0 + $0x7c8] sm:$0xff]
    %v286 = vld [vmem:[%s0 + $0x7d0] sm:$0xff]
    %v287 = vld [vmem:[%s0 + $0x7d8] sm:$0xff]
    %v288 = vld [vmem:[%s0 + $0x7e0] sm:$0xff]
    %v289 = vld [vmem:[%s0 + $0x7e8] sm:$0xff]
    %v290 = vld [vmem:[%s0 + $0x7f0] sm:$0xff]
    %v291 = vld [vmem:[%s0 + $0x7f8] sm:$0xff]
    %v292 = vpack.c.bf16 %v37, %v36
    %v293 = vpack.c.bf16 %v39, %v38
    %v294 = vpack.c.bf16 %v41, %v40
    %v295 = vpack.c.bf16 %v43, %v42
    %v296 = vpack.c.bf16 %v45, %v44
    %v297 = vpack.c.bf16 %v47, %v46
    %v298 = vpack.c.bf16 %v49, %v48
    %v299 = vpack.c.bf16 %v51, %v50
    %v300 = vpack.c.bf16 %v53, %v52
    %v301 = vpack.c.bf16 %v55, %v54
    %v302 = vpack.c.bf16 %v57, %v56
    %v303 = vpack.c.bf16 %v59, %v58
    %v304 = vpack.c.bf16 %v61, %v60
    %v305 = vpack.c.bf16 %v63, %v62
    %v306 = vpack.c.bf16 %v65, %v64
    %v307 = vpack.c.bf16 %v67, %v66
    %v308 = vpack.c.bf16 %v69, %v68
    %v309 = vpack.c.bf16 %v71, %v70
    %v310 = vpack.c.bf16 %v73, %v72
    %v311 = vpack.c.bf16 %v75, %v74
    %v312 = vpack.c.bf16 %v77, %v76
    %v313 = vpack.c.bf16 %v79, %v78
    %v314 = vpack.c.bf16 %v81, %v80
    %v315 = vpack.c.bf16 %v83, %v82
    %v316 = vpack.c.bf16 %v85, %v84
    %v317 = vpack.c.bf16 %v87, %v86
    %v318 = vpack.c.bf16 %v89, %v88
    %v319 = vpack.c.bf16 %v91, %v90
    %v320 = vpack.c.bf16 %v93, %v92
    %v321 = vpack.c.bf16 %v95, %v94
    %v322 = vpack.c.bf16 %v97, %v96
    %v323 = vpack.c.bf16 %v99, %v98
    %v324 = vpack.c.bf16 %v101, %v100
    %v325 = vpack.c.bf16 %v103, %v102
    %v326 = vpack.c.bf16 %v105, %v104
    %v327 = vpack.c.bf16 %v107, %v106
    %v328 = vpack.c.bf16 %v109, %v108
    %v329 = vpack.c.bf16 %v111, %v110
    %v330 = vpack.c.bf16 %v113, %v112
    %v331 = vpack.c.bf16 %v115, %v114
    %v332 = vpack.c.bf16 %v117, %v116
    %v333 = vpack.c.bf16 %v119, %v118
    %v334 = vpack.c.bf16 %v121, %v120
    %v335 = vpack.c.bf16 %v123, %v122
    %v336 = vpack.c.bf16 %v125, %v124
    %v337 = vpack.c.bf16 %v127, %v126
    %v338 = vpack.c.bf16 %v129, %v128
    %v339 = vpack.c.bf16 %v131, %v130
    %v340 = vpack.c.bf16 %v133, %v132
    %v341 = vpack.c.bf16 %v135, %v134
    %v342 = vpack.c.bf16 %v137, %v136
    %v343 = vpack.c.bf16 %v139, %v138
    %v344 = vpack.c.bf16 %v141, %v140
    %v345 = vpack.c.bf16 %v143, %v142
    %v346 = vpack.c.bf16 %v145, %v144
    %v347 = vpack.c.bf16 %v147, %v146
    %v348 = vpack.c.bf16 %v149, %v148
    %v349 = vpack.c.bf16 %v151, %v150
    %v350 = vpack.c.bf16 %v153, %v152
    %v351 = vpack.c.bf16 %v155, %v154
    %v352 = vpack.c.bf16 %v157, %v156
    %v353 = vpack.c.bf16 %v159, %v158
    %v354 = vpack.c.bf16 %v161, %v160
    %v355 = vpack.c.bf16 %v163, %v162
    %v356 = vpack.c.bf16 %v165, %v164
    %v357 = vpack.c.bf16 %v167, %v166
    %v358 = vpack.c.bf16 %v169, %v168
    %v359 = vpack.c.bf16 %v171, %v170
    %v360 = vpack.c.bf16 %v173, %v172
    %v361 = vpack.c.bf16 %v175, %v174
    %v362 = vpack.c.bf16 %v177, %v176
    %v363 = vpack.c.bf16 %v179, %v178
    %v364 = vpack.c.bf16 %v181, %v180
    %v365 = vpack.c.bf16 %v183, %v182
    %v366 = vpack.c.bf16 %v185, %v184
    %v367 = vpack.c.bf16 %v187, %v186
    %v368 = vpack.c.bf16 %v189, %v188
    %v369 = vpack.c.bf16 %v191, %v190
    %v370 = vpack.c.bf16 %v193, %v192
    %v371 = vpack.c.bf16 %v195, %v194
    %v372 = vpack.c.bf16 %v197, %v196
    %v373 = vpack.c.bf16 %v199, %v198
    %v374 = vpack.c.bf16 %v201, %v200
    %v375 = vpack.c.bf16 %v203, %v202
    %v376 = vpack.c.bf16 %v205, %v204
    %v377 = vpack.c.bf16 %v207, %v206
    %v378 = vpack.c.bf16 %v209, %v208
    %v379 = vpack.c.bf16 %v211, %v210
    %v380 = vpack.c.bf16 %v213, %v212
    %v381 = vpack.c.bf16 %v215, %v214
    %v382 = vpack.c.bf16 %v217, %v216
    %v383 = vpack.c.bf16 %v219, %v218
    %v384 = vpack.c.bf16 %v221, %v220
    %v385 = vpack.c.bf16 %v223, %v222
    %v386 = vpack.c.bf16 %v225, %v224
    %v387 = vpack.c.bf16 %v227, %v226
    %v388 = vpack.c.bf16 %v229, %v228
    %v389 = vpack.c.bf16 %v231, %v230
    %v390 = vpack.c.bf16 %v233, %v232
    %v391 = vpack.c.bf16 %v235, %v234
    %v392 = vpack.c.bf16 %v237, %v236
    %v393 = vpack.c.bf16 %v239, %v238
    %v394 = vpack.c.bf16 %v241, %v240
    %v395 = vpack.c.bf16 %v243, %v242
    %v396 = vpack.c.bf16 %v245, %v244
    %v397 = vpack.c.bf16 %v247, %v246
    %v398 = vpack.c.bf16 %v249, %v248
    %v399 = vpack.c.bf16 %v251, %v250
    %v400 = vpack.c.bf16 %v253, %v252
    %v401 = vpack.c.bf16 %v255, %v254
    %v402 = vpack.c.bf16 %v257, %v256
    %v403 = vpack.c.bf16 %v259, %v258
    %v404 = vpack.c.bf16 %v261, %v260
    %v405 = vpack.c.bf16 %v263, %v262
    %v406 = vpack.c.bf16 %v265, %v264
    %v407 = vpack.c.bf16 %v267, %v266
    %v408 = vpack.c.bf16 %v269, %v268
    %v409 = vpack.c.bf16 %v271, %v270
    %v410 = vpack.c.bf16 %v273, %v272
    %v411 = vpack.c.bf16 %v275, %v274
    %v412 = vpack.c.bf16 %v277, %v276
    %v413 = vpack.c.bf16 %v279, %v278
    %v414 = vpack.c.bf16 %v281, %v280
    %v415 = vpack.c.bf16 %v283, %v282
    %v416 = vpack.c.bf16 %v285, %v284
    %v417 = vpack.c.bf16 %v287, %v286
    %v418 = vpack.c.bf16 %v289, %v288
    %v419 = vpack.c.bf16 %v291, %v290
    %421 = vset.pattern.permute.xlu0 0
    %422 = vperm.xlu0 %421, %v33
    %v423 = vpop.permute.xlu0 %422
    %vm425 = vcmask 146432
    %v427 = vsel %vm425, %v28, 0
    %v430 = vsel %vm425, %v292, 0
    %v433 = vsel %vm425, %v293, 0
    %v436 = vsel %vm425, %v294, 0
    %v439 = vsel %vm425, %v295, 0
    %v442 = vsel %vm425, %v296, 0
    %v445 = vsel %vm425, %v297, 0
    %v448 = vsel %vm425, %v298, 0
    %v451 = vsel %vm425, %v299, 0
    %v454 = vsel %vm425, %v300, 0
    %v457 = vsel %vm425, %v301, 0
    %v460 = vsel %vm425, %v302, 0
    %v463 = vsel %vm425, %v303, 0
    %v466 = vsel %vm425, %v304, 0
    %v469 = vsel %vm425, %v305, 0
    %v472 = vsel %vm425, %v306, 0
    %v475 = vsel %vm425, %v307, 0
    %v478 = vsel %vm425, %v308, 0
    %v481 = vsel %vm425, %v309, 0
    %v484 = vsel %vm425, %v310, 0
    %v487 = vsel %vm425, %v311, 0
    %v490 = vsel %vm425, %v312, 0
    %v493 = vsel %vm425, %v313, 0
    %v496 = vsel %vm425, %v314, 0
    %v499 = vsel %vm425, %v315, 0
    %v502 = vsel %vm425, %v316, 0
    %v505 = vsel %vm425, %v317, 0
    %v508 = vsel %vm425, %v318, 0
    %v511 = vsel %vm425, %v319, 0
    %v514 = vsel %vm425, %v320, 0
    %v517 = vsel %vm425, %v321, 0
    %v520 = vsel %vm425, %v322, 0
    %v523 = vsel %vm425, %v323, 0
    %v526 = vsel %vm425, %v324, 0
    %v529 = vsel %vm425, %v325, 0
    %v532 = vsel %vm425, %v326, 0
    %v535 = vsel %vm425, %v327, 0
    %v538 = vsel %vm425, %v328, 0
    %v541 = vsel %vm425, %v329, 0
    %v544 = vsel %vm425, %v330, 0
    %v547 = vsel %vm425, %v331, 0
    %v550 = vsel %vm425, %v332, 0
    %v553 = vsel %vm425, %v333, 0
    %v556 = vsel %vm425, %v334, 0
    %v559 = vsel %vm425, %v335, 0
    %v562 = vsel %vm425, %v336, 0
    %v565 = vsel %vm425, %v337, 0
    %v568 = vsel %vm425, %v338, 0
    %v571 = vsel %vm425, %v339, 0
    %v574 = vsel %vm425, %v340, 0
    %v577 = vsel %vm425, %v341, 0
    %v580 = vsel %vm425, %v342, 0
    %v583 = vsel %vm425, %v343, 0
    %v586 = vsel %vm425, %v344, 0
    %v589 = vsel %vm425, %v345, 0
    %v592 = vsel %vm425, %v346, 0
    %v595 = vsel %vm425, %v347, 0
    %v598 = vsel %vm425, %v348, 0
    %v601 = vsel %vm425, %v349, 0
    %v604 = vsel %vm425, %v350, 0
    %v607 = vsel %vm425, %v351, 0
    %v610 = vsel %vm425, %v352, 0
    %v613 = vsel %vm425, %v353, 0
    %v616 = vsel %vm425, %v354, 0
    %v619 = vsel %vm425, %v355, 0
    %v622 = vsel %vm425, %v356, 0
    %v625 = vsel %vm425, %v357, 0
    %v628 = vsel %vm425, %v358, 0
    %v631 = vsel %vm425, %v359, 0
    %v634 = vsel %vm425, %v360, 0
    %v637 = vsel %vm425, %v361, 0
    %v640 = vsel %vm425, %v362, 0
    %v643 = vsel %vm425, %v363, 0
    %v646 = vsel %vm425, %v364, 0
    %v649 = vsel %vm425, %v365, 0
    %v652 = vsel %vm425, %v366, 0
    %v655 = vsel %vm425, %v367, 0
    %v658 = vsel %vm425, %v368, 0
    %v661 = vsel %vm425, %v369, 0
    %v664 = vsel %vm425, %v370, 0
    %v667 = vsel %vm425, %v371, 0
    %v670 = vsel %vm425, %v372, 0
    %v673 = vsel %vm425, %v373, 0
    %v676 = vsel %vm425, %v374, 0
    %v679 = vsel %vm425, %v375, 0
    %v682 = vsel %vm425, %v376, 0
    %v685 = vsel %vm425, %v377, 0
    %v688 = vsel %vm425, %v378, 0
    %v691 = vsel %vm425, %v379, 0
    %v694 = vsel %vm425, %v380, 0
    %v697 = vsel %vm425, %v381, 0
    %v700 = vsel %vm425, %v382, 0
    %v703 = vsel %vm425, %v383, 0
    %v706 = vsel %vm425, %v384, 0
    %v709 = vsel %vm425, %v385, 0
    %v712 = vsel %vm425, %v386, 0
    %v715 = vsel %vm425, %v387, 0
    %v718 = vsel %vm425, %v388, 0
    %v721 = vsel %vm425, %v389, 0
    %v724 = vsel %vm425, %v390, 0
    %v727 = vsel %vm425, %v391, 0
    %v730 = vsel %vm425, %v392, 0
    %v733 = vsel %vm425, %v393, 0
    %v736 = vsel %vm425, %v394, 0
    %v739 = vsel %vm425, %v395, 0
    %v742 = vsel %vm425, %v396, 0
    %v745 = vsel %vm425, %v397, 0
    %v748 = vsel %vm425, %v398, 0
    %v751 = vsel %vm425, %v399, 0
    %v754 = vsel %vm425, %v400, 0
    %v757 = vsel %vm425, %v401, 0
    %v760 = vsel %vm425, %v402, 0
    %v763 = vsel %vm425, %v403, 0
    %v766 = vsel %vm425, %v404, 0
    %v769 = vsel %vm425, %v405, 0
    %v772 = vsel %vm425, %v406, 0
    %v775 = vsel %vm425, %v407, 0
    %v778 = vsel %vm425, %v408, 0
    %v781 = vsel %vm425, %v409, 0
    %v784 = vsel %vm425, %v410, 0
    %v787 = vsel %vm425, %v411, 0
    %v790 = vsel %vm425, %v412, 0
    %v793 = vsel %vm425, %v413, 0
    %v796 = vsel %vm425, %v414, 0
    %v799 = vsel %vm425, %v415, 0
    %v802 = vsel %vm425, %v416, 0
    %v805 = vsel %vm425, %v417, 0
    %v808 = vsel %vm425, %v418, 0
    %v811 = vsel %vm425, %v419, 0
    %813 = vmatprep.subr.bf16.mxu0 0
    %814 = vmatpush1.bf16.xpose.msra.mxu0 %v430
    %815 = vmatprep.subr.bf16.mxu0 0
    %816 = vmatpush1.bf16.xpose.msra.mxu0 %v433
    %817 = vmatprep.subr.bf16.mxu0 0
    %818 = vmatpush1.bf16.xpose.msra.mxu0 %v436
    %819 = vmatprep.subr.bf16.mxu0 0
    %820 = vmatpush1.bf16.xpose.msra.mxu0 %v439
    %821 = vmatprep.subr.bf16.mxu0 0
    %822 = vmatpush1.bf16.xpose.msra.mxu0 %v442
    %823 = vmatprep.subr.bf16.mxu0 0
    %824 = vmatpush1.bf16.xpose.msra.mxu0 %v445
    %825 = vmatprep.subr.bf16.mxu0 0
    %826 = vmatpush1.bf16.xpose.msra.mxu0 %v448
    %827 = vmatprep.subr.bf16.mxu0 0
    %828 = vmatpush1.bf16.xpose.msra.mxu0 %v451
    %829 = vmatprep.subr.bf16.mxu0 0
    %830 = vmatpush1.bf16.xpose.msra.mxu0 %v454
    %831 = vmatprep.subr.bf16.mxu0 0
    %832 = vmatpush1.bf16.xpose.msra.mxu0 %v457
    %833 = vmatprep.subr.bf16.mxu0 0
    %834 = vmatpush1.bf16.xpose.msra.mxu0 %v460
    %835 = vmatprep.subr.bf16.mxu0 0
    %836 = vmatpush1.bf16.xpose.msra.mxu0 %v463
    %837 = vmatprep.subr.bf16.mxu0 0
    %838 = vmatpush1.bf16.xpose.msra.mxu0 %v466
    %839 = vmatprep.subr.bf16.mxu0 0
    %840 = vmatpush1.bf16.xpose.msra.mxu0 %v469
    %841 = vmatprep.subr.bf16.mxu0 0
    %842 = vmatpush1.bf16.xpose.msra.mxu0 %v472
    %843 = vmatprep.subr.bf16.mxu0 0
    %844 = vmatpush1.bf16.xpose.msra.mxu0 %v475
    %845 = vmatprep.mubr.bf16.mxu0 0
    %846 = vmatmul.mubr.bf16.gmra.mrb[0].mxu0 %v427
    %v847 = vpop.f32.mrb[0].mxu0
    %v848 = vadd.f32 %v423, %v847
    %v849 = vpop.f32.mrb[0].mxu0
    %v850 = vadd.f32 %v423, %v849
    %v851 = vpop.f32.mrb[0].mxu0
    %v852 = vpop.f32.mrb[0].mxu0
    %853 = vdwg.mxu0
    %854 = vmatprep.subr.bf16.mxu0 0
    %855 = vmatpush1.bf16.xpose.msra.mxu0 %v478
    %856 = vmatprep.subr.bf16.mxu0 0
    %857 = vmatpush1.bf16.xpose.msra.mxu0 %v481
    %858 = vmatprep.subr.bf16.mxu0 0
    %859 = vmatpush1.bf16.xpose.msra.mxu0 %v484
    %860 = vmatprep.subr.bf16.mxu0 0
    %861 = vmatpush1.bf16.xpose.msra.mxu0 %v487
    %862 = vmatprep.subr.bf16.mxu0 0
    %863 = vmatpush1.bf16.xpose.msra.mxu0 %v490
    %864 = vmatprep.subr.bf16.mxu0 0
    %865 = vmatpush1.bf16.xpose.msra.mxu0 %v493
    %866 = vmatprep.subr.bf16.mxu0 0
    %867 = vmatpush1.bf16.xpose.msra.mxu0 %v496
    %868 = vmatprep.subr.bf16.mxu0 0
    %869 = vmatpush1.bf16.xpose.msra.mxu0 %v499
    %870 = vmatprep.subr.bf16.mxu0 0
    %871 = vmatpush1.bf16.xpose.msra.mxu0 %v502
    %872 = vmatprep.subr.bf16.mxu0 0
    %873 = vmatpush1.bf16.xpose.msra.mxu0 %v505
    %874 = vmatprep.subr.bf16.mxu0 0
    %875 = vmatpush1.bf16.xpose.msra.mxu0 %v508
    %876 = vmatprep.subr.bf16.mxu0 0
    %877 = vmatpush1.bf16.xpose.msra.mxu0 %v511
    %878 = vmatprep.subr.bf16.mxu0 0
    %879 = vmatpush1.bf16.xpose.msra.mxu0 %v514
    %880 = vmatprep.subr.bf16.mxu0 0
    %881 = vmatpush1.bf16.xpose.msra.mxu0 %v517
    %882 = vmatprep.subr.bf16.mxu0 0
    %883 = vmatpush1.bf16.xpose.msra.mxu0 %v520
    %884 = vmatprep.subr.bf16.mxu0 0
    %885 = vmatpush1.bf16.xpose.msra.mxu0 %v523
    %886 = vmatprep.mubr.bf16.mxu0 0
    %887 = vmatmul.mubr.bf16.gmra.mrb[0].mxu0 %v427
    %v888 = vpop.f32.mrb[0].mxu0
    %v889 = vadd.f32 %v423, %v888
    %v890 = vpop.f32.mrb[0].mxu0
    %v891 = vadd.f32 %v423, %v890
    %v892 = vpop.f32.mrb[0].mxu0
    %v893 = vpop.f32.mrb[0].mxu0
    %894 = vdwg.mxu0
    %895 = vmatprep.subr.bf16.mxu0 0
    %896 = vmatpush1.bf16.xpose.msra.mxu0 %v526
    %897 = vmatprep.subr.bf16.mxu0 0
    %898 = vmatpush1.bf16.xpose.msra.mxu0 %v529
    %899 = vmatprep.subr.bf16.mxu0 0
    %900 = vmatpush1.bf16.xpose.msra.mxu0 %v532
    %901 = vmatprep.subr.bf16.mxu0 0
    %902 = vmatpush1.bf16.xpose.msra.mxu0 %v535
    %903 = vmatprep.subr.bf16.mxu0 0
    %904 = vmatpush1.bf16.xpose.msra.mxu0 %v538
    %905 = vmatprep.subr.bf16.mxu0 0
    %906 = vmatpush1.bf16.xpose.msra.mxu0 %v541
    %907 = vmatprep.subr.bf16.mxu0 0
    %908 = vmatpush1.bf16.xpose.msra.mxu0 %v544
    %909 = vmatprep.subr.bf16.mxu0 0
    %910 = vmatpush1.bf16.xpose.msra.mxu0 %v547
    %911 = vmatprep.subr.bf16.mxu0 0
    %912 = vmatpush1.bf16.xpose.msra.mxu0 %v550
    %913 = vmatprep.subr.bf16.mxu0 0
    %914 = vmatpush1.bf16.xpose.msra.mxu0 %v553
    %915 = vmatprep.subr.bf16.mxu0 0
    %916 = vmatpush1.bf16.xpose.msra.mxu0 %v556
    %917 = vmatprep.subr.bf16.mxu0 0
    %918 = vmatpush1.bf16.xpose.msra.mxu0 %v559
    %919 = vmatprep.subr.bf16.mxu0 0
    %920 = vmatpush1.bf16.xpose.msra.mxu0 %v562
    %921 = vmatprep.subr.bf16.mxu0 0
    %922 = vmatpush1.bf16.xpose.msra.mxu0 %v565
    %923 = vmatprep.subr.bf16.mxu0 0
    %924 = vmatpush1.bf16.xpose.msra.mxu0 %v568
    %925 = vmatprep.subr.bf16.mxu0 0
    %926 = vmatpush1.bf16.xpose.msra.mxu0 %v571
    %927 = vmatprep.mubr.bf16.mxu0 0
    %928 = vmatmul.mubr.bf16.gmra.mrb[0].mxu0 %v427
    %v929 = vpop.f32.mrb[0].mxu0
    %v930 = vadd.f32 %v423, %v929
    %v931 = vpop.f32.mrb[0].mxu0
    %v932 = vadd.f32 %v423, %v931
    %v933 = vpop.f32.mrb[0].mxu0
    %v934 = vpop.f32.mrb[0].mxu0
    %935 = vdwg.mxu0
    %936 = vmatprep.subr.bf16.mxu0 0
    %937 = vmatpush1.bf16.xpose.msra.mxu0 %v574
    %938 = vmatprep.subr.bf16.mxu0 0
    %939 = vmatpush1.bf16.xpose.msra.mxu0 %v577
    %940 = vmatprep.subr.bf16.mxu0 0
    %941 = vmatpush1.bf16.xpose.msra.mxu0 %v580
    %942 = vmatprep.subr.bf16.mxu0 0
    %943 = vmatpush1.bf16.xpose.msra.mxu0 %v583
    %944 = vmatprep.subr.bf16.mxu0 0
    %945 = vmatpush1.bf16.xpose.msra.mxu0 %v586
    %946 = vmatprep.subr.bf16.mxu0 0
    %947 = vmatpush1.bf16.xpose.msra.mxu0 %v589
    %948 = vmatprep.subr.bf16.mxu0 0
    %949 = vmatpush1.bf16.xpose.msra.mxu0 %v592
    %950 = vmatprep.subr.bf16.mxu0 0
    %951 = vmatpush1.bf16.xpose.msra.mxu0 %v595
    %952 = vmatprep.subr.bf16.mxu0 0
    %953 = vmatpush1.bf16.xpose.msra.mxu0 %v598
    %954 = vmatprep.subr.bf16.mxu0 0
    %955 = vmatpush1.bf16.xpose.msra.mxu0 %v601
    %956 = vmatprep.subr.bf16.mxu0 0
    %957 = vmatpush1.bf16.xpose.msra.mxu0 %v604
    %958 = vmatprep.subr.bf16.mxu0 0
    %959 = vmatpush1.bf16.xpose.msra.mxu0 %v607
    %960 = vmatprep.subr.bf16.mxu0 0
    %961 = vmatpush1.bf16.xpose.msra.mxu0 %v610
    %962 = vmatprep.subr.bf16.mxu0 0
    %963 = vmatpush1.bf16.xpose.msra.mxu0 %v613
    %964 = vmatprep.subr.bf16.mxu0 0
    %965 = vmatpush1.bf16.xpose.msra.mxu0 %v616
    %966 = vmatprep.subr.bf16.mxu0 0
    %967 = vmatpush1.bf16.xpose.msra.mxu0 %v619
    %968 = vmatprep.mubr.bf16.mxu0 0
    %969 = vmatmul.mubr.bf16.gmra.mrb[0].mxu0 %v427
    %v970 = vpop.f32.mrb[0].mxu0
    %v971 = vadd.f32 %v423, %v970
    %v972 = vpop.f32.mrb[0].mxu0
    %v973 = vadd.f32 %v423, %v972
    %v974 = vpop.f32.mrb[0].mxu0
    %v975 = vpop.f32.mrb[0].mxu0
    %976 = vdwg.mxu0
    %977 = vmatprep.subr.bf16.mxu0 0
    %978 = vmatpush1.bf16.xpose.msra.mxu0 %v622
    %979 = vmatprep.subr.bf16.mxu0 0
    %980 = vmatpush1.bf16.xpose.msra.mxu0 %v625
    %981 = vmatprep.subr.bf16.mxu0 0
    %982 = vmatpush1.bf16.xpose.msra.mxu0 %v628
    %983 = vmatprep.subr.bf16.mxu0 0
    %984 = vmatpush1.bf16.xpose.msra.mxu0 %v631
    %985 = vmatprep.subr.bf16.mxu0 0
    %986 = vmatpush1.bf16.xpose.msra.mxu0 %v634
    %987 = vmatprep.subr.bf16.mxu0 0
    %988 = vmatpush1.bf16.xpose.msra.mxu0 %v637
    %989 = vmatprep.subr.bf16.mxu0 0
    %990 = vmatpush1.bf16.xpose.msra.mxu0 %v640
    %991 = vmatprep.subr.bf16.mxu0 0
    %992 = vmatpush1.bf16.xpose.msra.mxu0 %v643
    %993 = vmatprep.subr.bf16.mxu0 0
    %994 = vmatpush1.bf16.xpose.msra.mxu0 %v646
    %995 = vmatprep.subr.bf16.mxu0 0
    %996 = vmatpush1.bf16.xpose.msra.mxu0 %v649
    %997 = vmatprep.subr.bf16.mxu0 0
    %998 = vmatpush1.bf16.xpose.msra.mxu0 %v652
    %999 = vmatprep.subr.bf16.mxu0 0
    %1000 = vmatpush1.bf16.xpose.msra.mxu0 %v655
    %1001 = vmatprep.subr.bf16.mxu0 0
    %1002 = vmatpush1.bf16.xpose.msra.mxu0 %v658
    %1003 = vmatprep.subr.bf16.mxu0 0
    %1004 = vmatpush1.bf16.xpose.msra.mxu0 %v661
    %1005 = vmatprep.subr.bf16.mxu0 0
    %1006 = vmatpush1.bf16.xpose.msra.mxu0 %v664
    %1007 = vmatprep.subr.bf16.mxu0 0
    %1008 = vmatpush1.bf16.xpose.msra.mxu0 %v667
    %1009 = vmatprep.mubr.bf16.mxu0 0
    %1010 = vmatmul.mubr.bf16.gmra.mrb[0].mxu0 %v427
    %v1011 = vpop.f32.mrb[0].mxu0
    %v1012 = vadd.f32 %v423, %v1011
    %v1013 = vpop.f32.mrb[0].mxu0
    %v1014 = vadd.f32 %v423, %v1013
    %v1015 = vpop.f32.mrb[0].mxu0
    %v1016 = vpop.f32.mrb[0].mxu0
    %1017 = vdwg.mxu0
    %1018 = vmatprep.subr.bf16.mxu0 0
    %1019 = vmatpush1.bf16.xpose.msra.mxu0 %v670
    %1020 = vmatprep.subr.bf16.mxu0 0
    %1021 = vmatpush1.bf16.xpose.msra.mxu0 %v673
    %1022 = vmatprep.subr.bf16.mxu0 0
    %1023 = vmatpush1.bf16.xpose.msra.mxu0 %v676
    %1024 = vmatprep.subr.bf16.mxu0 0
    %1025 = vmatpush1.bf16.xpose.msra.mxu0 %v679
    %1026 = vmatprep.subr.bf16.mxu0 0
    %1027 = vmatpush1.bf16.xpose.msra.mxu0 %v682
    %1028 = vmatprep.subr.bf16.mxu0 0
    %1029 = vmatpush1.bf16.xpose.msra.mxu0 %v685
    %1030 = vmatprep.subr.bf16.mxu0 0
    %1031 = vmatpush1.bf16.xpose.msra.mxu0 %v688
    %1032 = vmatprep.subr.bf16.mxu0 0
    %1033 = vmatpush1.bf16.xpose.msra.mxu0 %v691
    %1034 = vmatprep.subr.bf16.mxu0 0
    %1035 = vmatpush1.bf16.xpose.msra.mxu0 %v694
    %1036 = vmatprep.subr.bf16.mxu0 0
    %1037 = vmatpush1.bf16.xpose.msra.mxu0 %v697
    %1038 = vmatprep.subr.bf16.mxu0 0
    %1039 = vmatpush1.bf16.xpose.msra.mxu0 %v700
    %1040 = vmatprep.subr.bf16.mxu0 0
    %1041 = vmatpush1.bf16.xpose.msra.mxu0 %v703
    %1042 = vmatprep.subr.bf16.mxu0 0
    %1043 = vmatpush1.bf16.xpose.msra.mxu0 %v706
    %1044 = vmatprep.subr.bf16.mxu0 0
    %1045 = vmatpush1.bf16.xpose.msra.mxu0 %v709
    %1046 = vmatprep.subr.bf16.mxu0 0
    %1047 = vmatpush1.bf16.xpose.msra.mxu0 %v712
    %1048 = vmatprep.subr.bf16.mxu0 0
    %1049 = vmatpush1.bf16.xpose.msra.mxu0 %v715
    %1050 = vmatprep.mubr.bf16.mxu0 0
    %1051 = vmatmul.mubr.bf16.gmra.mrb[0].mxu0 %v427
    %v1052 = vpop.f32.mrb[0].mxu0
    %v1053 = vadd.f32 %v423, %v1052
    %v1054 = vpop.f32.mrb[0].mxu0
    %v1055 = vadd.f32 %v423, %v1054
    %v1056 = vpop.f32.mrb[0].mxu0
    %v1057 = vpop.f32.mrb[0].mxu0
    %1058 = vdwg.mxu0
    %1059 = vmatprep.subr.bf16.mxu0 0
    %1060 = vmatpush1.bf16.xpose.msra.mxu0 %v718
    %1061 = vmatprep.subr.bf16.mxu0 0
    %1062 = vmatpush1.bf16.xpose.msra.mxu0 %v721
    %1063 = vmatprep.subr.bf16.mxu0 0
    %1064 = vmatpush1.bf16.xpose.msra.mxu0 %v724
    %1065 = vmatprep.subr.bf16.mxu0 0
    %1066 = vmatpush1.bf16.xpose.msra.mxu0 %v727
    %1067 = vmatprep.subr.bf16.mxu0 0
    %1068 = vmatpush1.bf16.xpose.msra.mxu0 %v730
    %1069 = vmatprep.subr.bf16.mxu0 0
    %1070 = vmatpush1.bf16.xpose.msra.mxu0 %v733
    %1071 = vmatprep.subr.bf16.mxu0 0
    %1072 = vmatpush1.bf16.xpose.msra.mxu0 %v736
    %1073 = vmatprep.subr.bf16.mxu0 0
    %1074 = vmatpush1.bf16.xpose.msra.mxu0 %v739
    %1075 = vmatprep.subr.bf16.mxu0 0
    %1076 = vmatpush1.bf16.xpose.msra.mxu0 %v742
    %1077 = vmatprep.subr.bf16.mxu0 0
    %1078 = vmatpush1.bf16.xpose.msra.mxu0 %v745
    %1079 = vmatprep.subr.bf16.mxu0 0
    %1080 = vmatpush1.bf16.xpose.msra.mxu0 %v748
    %1081 = vmatprep.subr.bf16.mxu0 0
    %1082 = vmatpush1.bf16.xpose.msra.mxu0 %v751
    %1083 = vmatprep.subr.bf16.mxu0 0
    %1084 = vmatpush1.bf16.xpose.msra.mxu0 %v754
    %1085 = vmatprep.subr.bf16.mxu0 0
    %1086 = vmatpush1.bf16.xpose.msra.mxu0 %v757
    %1087 = vmatprep.subr.bf16.mxu0 0
    %1088 = vmatpush1.bf16.xpose.msra.mxu0 %v760
    %1089 = vmatprep.subr.bf16.mxu0 0
    %1090 = vmatpush1.bf16.xpose.msra.mxu0 %v763
    %1091 = vmatprep.mubr.bf16.mxu0 0
    %1092 = vmatmul.mubr.bf16.gmra.mrb[0].mxu0 %v427
    %v1093 = vpop.f32.mrb[0].mxu0
    %v1094 = vadd.f32 %v423, %v1093
    %v1095 = vpop.f32.mrb[0].mxu0
    %v1096 = vadd.f32 %v423, %v1095
    %v1097 = vpop.f32.mrb[0].mxu0
    %v1098 = vpop.f32.mrb[0].mxu0
    %1099 = vdwg.mxu0
    %1100 = vmatprep.subr.bf16.mxu0 0
    %1101 = vmatpush1.bf16.xpose.msra.mxu0 %v766
    %1102 = vmatprep.subr.bf16.mxu0 0
    %1103 = vmatpush1.bf16.xpose.msra.mxu0 %v769
    %1104 = vmatprep.subr.bf16.mxu0 0
    %1105 = vmatpush1.bf16.xpose.msra.mxu0 %v772
    %1106 = vmatprep.subr.bf16.mxu0 0
    %1107 = vmatpush1.bf16.xpose.msra.mxu0 %v775
    %1108 = vmatprep.subr.bf16.mxu0 0
    %1109 = vmatpush1.bf16.xpose.msra.mxu0 %v778
    %1110 = vmatprep.subr.bf16.mxu0 0
    %1111 = vmatpush1.bf16.xpose.msra.mxu0 %v781
    %1112 = vmatprep.subr.bf16.mxu0 0
    %1113 = vmatpush1.bf16.xpose.msra.mxu0 %v784
    %1114 = vmatprep.subr.bf16.mxu0 0
    %1115 = vmatpush1.bf16.xpose.msra.mxu0 %v787
    %1116 = vmatprep.subr.bf16.mxu0 0
    %1117 = vmatpush1.bf16.xpose.msra.mxu0 %v790
    %1118 = vmatprep.subr.bf16.mxu0 0
    %1119 = vmatpush1.bf16.xpose.msra.mxu0 %v793
    %1120 = vmatprep.subr.bf16.mxu0 0
    %1121 = vmatpush1.bf16.xpose.msra.mxu0 %v796
    %1122 = vmatprep.subr.bf16.mxu0 0
    %1123 = vmatpush1.bf16.xpose.msra.mxu0 %v799
    %1124 = vmatprep.subr.bf16.mxu0 0
    %1125 = vmatpush1.bf16.xpose.msra.mxu0 %v802
    %1126 = vmatprep.subr.bf16.mxu0 0
    %1127 = vmatpush1.bf16.xpose.msra.mxu0 %v805
    %1128 = vmatprep.subr.bf16.mxu0 0
    %1129 = vmatpush1.bf16.xpose.msra.mxu0 %v808
    %1130 = vmatprep.subr.bf16.mxu0 0
    %1131 = vmatpush1.bf16.xpose.msra.mxu0 %v811
    %1132 = vmatprep.mubr.bf16.mxu0 0
    %1133 = vmatmul.mubr.bf16.gmra.mrb[0].mxu0 %v427
    %v1134 = vpop.f32.mrb[0].mxu0
    %v1135 = vadd.f32 %v423, %v1134
    %v1136 = vpop.f32.mrb[0].mxu0
    %v1137 = vadd.f32 %v423, %v1136
    %v1138 = vpop.f32.mrb[0].mxu0
    %v1139 = vpop.f32.mrb[0].mxu0
    %1140 = vdwg.mxu0
    %v1141 = vmax.f32 %v848, 0.0
    %v1142 = vmax.f32 %v850, 0.0
    %v1143 = vmax.f32 %v889, 0.0
    %v1144 = vmax.f32 %v891, 0.0
    %v1145 = vmax.f32 %v930, 0.0
    %v1146 = vmax.f32 %v932, 0.0
    %v1147 = vmax.f32 %v971, 0.0
    %v1148 = vmax.f32 %v973, 0.0
    %v1149 = vmax.f32 %v1012, 0.0
    %v1150 = vmax.f32 %v1014, 0.0
    %v1151 = vmax.f32 %v1053, 0.0
    %v1152 = vmax.f32 %v1055, 0.0
    %v1153 = vmax.f32 %v1094, 0.0
    %v1154 = vmax.f32 %v1096, 0.0
    %v1155 = vmax.f32 %v1135, 0.0
    %v1156 = vmax.f32 %v1137, 0.0
    %v1157 = vpack.c.bf16 %v1141, %v1141
    %v1158 = vpack.c.bf16 %v1142, %v1142
    %v1159 = vpack.c.bf16 %v1143, %v1143
    %v1160 = vpack.c.bf16 %v1144, %v1144
    %v1161 = vpack.c.bf16 %v1145, %v1145
    %v1162 = vpack.c.bf16 %v1146, %v1146
    %v1163 = vpack.c.bf16 %v1147, %v1147
    %v1164 = vpack.c.bf16 %v1148, %v1148
    %v1165 = vpack.c.bf16 %v1149, %v1149
    %v1166 = vpack.c.bf16 %v1150, %v1150
    %v1167 = vpack.c.bf16 %v1151, %v1151
    %v1168 = vpack.c.bf16 %v1152, %v1152
    %v1169 = vpack.c.bf16 %v1153, %v1153
    %v1170 = vpack.c.bf16 %v1154, %v1154
    %v1171 = vpack.c.bf16 %v1155, %v1155
    %v1172 = vpack.c.bf16 %v1156, %v1156
    %1174 = vset.pattern.permute.xlu0 0
    %1175 = vperm.xlu0 %1174, %v34
    %v1176 = vpop.permute.xlu0 %1175
    %vm1178 = vcmask 64512
    %v1180 = vsel %vm1178, %v30, 0
    %vm1182 = vcmask 1043456
    %v1184 = vsel %vm1182, %v1157, 0
    %v1187 = vsel %vm1182, %v1158, 0
    %v1190 = vsel %vm1182, %v1159, 0
    %v1193 = vsel %vm1182, %v1160, 0
    %v1196 = vsel %vm1182, %v1161, 0
    %v1199 = vsel %vm1182, %v1162, 0
    %v1202 = vsel %vm1182, %v1163, 0
    %v1205 = vsel %vm1182, %v1164, 0
    %v1208 = vsel %vm1182, %v1165, 0
    %v1211 = vsel %vm1182, %v1166, 0
    %v1214 = vsel %vm1182, %v1167, 0
    %v1217 = vsel %vm1182, %v1168, 0
    %v1220 = vsel %vm1182, %v1169, 0
    %v1223 = vsel %vm1182, %v1170, 0
    %v1226 = vsel %vm1182, %v1171, 0
    %v1229 = vsel %vm1182, %v1172, 0
    %1231 = vmatprep.subr.bf16.mxu0 %v1187
    %1232 = vmatpush1.bf16.msra.mxu0 %v1184
    %1233 = vmatprep.subr.bf16.mxu0 0
    %1234 = vmatpush1.bf16.msra.mxu0 0
    %1235 = vmatprep.subr.bf16.mxu0 0
    %1236 = vmatpush1.bf16.msra.mxu0 0
    %1237 = vmatprep.subr.bf16.mxu0 0
    %1238 = vmatpush1.bf16.msra.mxu0 0
    %1239 = vmatprep.subr.bf16.mxu0 0
    %1240 = vmatpush1.bf16.msra.mxu0 0
    %1241 = vmatprep.subr.bf16.mxu0 0
    %1242 = vmatpush1.bf16.msra.mxu0 0
    %1243 = vmatprep.subr.bf16.mxu0 0
    %1244 = vmatpush1.bf16.msra.mxu0 0
    %1245 = vmatprep.subr.bf16.mxu0 0
    %1246 = vmatpush1.bf16.msra.mxu0 0
    %1247 = vmatprep.subr.bf16.mxu0 0
    %1248 = vmatpush1.bf16.msra.mxu0 0
    %1249 = vmatprep.subr.bf16.mxu0 0
    %1250 = vmatpush1.bf16.msra.mxu0 0
    %1251 = vmatprep.subr.bf16.mxu0 0
    %1252 = vmatpush1.bf16.msra.mxu0 0
    %1253 = vmatprep.subr.bf16.mxu0 0
    %1254 = vmatpush1.bf16.msra.mxu0 0
    %1255 = vmatprep.subr.bf16.mxu0 0
    %1256 = vmatpush1.bf16.msra.mxu0 0
    %1257 = vmatprep.subr.bf16.mxu0 0
    %1258 = vmatpush1.bf16.msra.mxu0 0
    %1259 = vmatprep.subr.bf16.mxu0 0
    %1260 = vmatpush1.bf16.msra.mxu0 0
    %1261 = vmatprep.subr.bf16.mxu0 0
    %1262 = vmatpush1.bf16.msra.mxu0 0
    %1263 = vmatprep.mubr.bf16.mxu0 0
    %1264 = vmatmul.mubr.bf16.gmra.mrb[0].mxu0 %v1180
    %v1265 = vpop.f32.mrb[0].mxu0
    %v1266 = vadd.f32 %v1176, %v1265
    %v1267 = vpop.f32.mrb[0].mxu0
    %v1268 = vadd.f32 %v1176, %v1267
    %v1269 = vpop.f32.mrb[0].mxu0
    %v1270 = vpop.f32.mrb[0].mxu0
    %1271 = vdwg.mxu0
    %1272 = vmatprep.subr.bf16.mxu0 %v1193
    %1273 = vmatpush1.bf16.msra.mxu0 %v1190
    %1274 = vmatprep.subr.bf16.mxu0 0
    %1275 = vmatpush1.bf16.msra.mxu0 0
    %1276 = vmatprep.subr.bf16.mxu0 0
    %1277 = vmatpush1.bf16.msra.mxu0 0
    %1278 = vmatprep.subr.bf16.mxu0 0
    %1279 = vmatpush1.bf16.msra.mxu0 0
    %1280 = vmatprep.subr.bf16.mxu0 0
    %1281 = vmatpush1.bf16.msra.mxu0 0
    %1282 = vmatprep.subr.bf16.mxu0 0
    %1283 = vmatpush1.bf16.msra.mxu0 0
    %1284 = vmatprep.subr.bf16.mxu0 0
    %1285 = vmatpush1.bf16.msra.mxu0 0
    %1286 = vmatprep.subr.bf16.mxu0 0
    %1287 = vmatpush1.bf16.msra.mxu0 0
    %1288 = vmatprep.subr.bf16.mxu0 0
    %1289 = vmatpush1.bf16.msra.mxu0 0
    %1290 = vmatprep.subr.bf16.mxu0 0
    %1291 = vmatpush1.bf16.msra.mxu0 0
    %1292 = vmatprep.subr.bf16.mxu0 0
    %1293 = vmatpush1.bf16.msra.mxu0 0
    %1294 = vmatprep.subr.bf16.mxu0 0
    %1295 = vmatpush1.bf16.msra.mxu0 0
    %1296 = vmatprep.subr.bf16.mxu0 0
    %1297 = vmatpush1.bf16.msra.mxu0 0
    %1298 = vmatprep.subr.bf16.mxu0 0
    %1299 = vmatpush1.bf16.msra.mxu0 0
    %1300 = vmatprep.subr.bf16.mxu0 0
    %1301 = vmatpush1.bf16.msra.mxu0 0
    %1302 = vmatprep.subr.bf16.mxu0 0
    %1303 = vmatpush1.bf16.msra.mxu0 0
    %1304 = vmatprep.mubr.bf16.mxu0 0
    %1305 = vmatmul.mubr.bf16.gmra.mrb[0].mxu0 %v1180
    %v1306 = vpop.f32.mrb[0].mxu0
    %v1307 = vadd.f32 %v1176, %v1306
    %v1308 = vpop.f32.mrb[0].mxu0
    %v1309 = vadd.f32 %v1176, %v1308
    %v1310 = vpop.f32.mrb[0].mxu0
    %v1311 = vpop.f32.mrb[0].mxu0
    %1312 = vdwg.mxu0
    %1313 = vmatprep.subr.bf16.mxu0 %v1199
    %1314 = vmatpush1.bf16.msra.mxu0 %v1196
    %1315 = vmatprep.subr.bf16.mxu0 0
    %1316 = vmatpush1.bf16.msra.mxu0 0
    %1317 = vmatprep.subr.bf16.mxu0 0
    %1318 = vmatpush1.bf16.msra.mxu0 0
    %1319 = vmatprep.subr.bf16.mxu0 0
    %1320 = vmatpush1.bf16.msra.mxu0 0
    %1321 = vmatprep.subr.bf16.mxu0 0
    %1322 = vmatpush1.bf16.msra.mxu0 0
    %1323 = vmatprep.subr.bf16.mxu0 0
    %1324 = vmatpush1.bf16.msra.mxu0 0
    %1325 = vmatprep.subr.bf16.mxu0 0
    %1326 = vmatpush1.bf16.msra.mxu0 0
    %1327 = vmatprep.subr.bf16.mxu0 0
    %1328 = vmatpush1.bf16.msra.mxu0 0
    %1329 = vmatprep.subr.bf16.mxu0 0
    %1330 = vmatpush1.bf16.msra.mxu0 0
    %1331 = vmatprep.subr.bf16.mxu0 0
    %1332 = vmatpush1.bf16.msra.mxu0 0
    %1333 = vmatprep.subr.bf16.mxu0 0
    %1334 = vmatpush1.bf16.msra.mxu0 0
    %1335 = vmatprep.subr.bf16.mxu0 0
    %1336 = vmatpush1.bf16.msra.mxu0 0
    %1337 = vmatprep.subr.bf16.mxu0 0
    %1338 = vmatpush1.bf16.msra.mxu0 0
    %1339 = vmatprep.subr.bf16.mxu0 0
    %1340 = vmatpush1.bf16.msra.mxu0 0
    %1341 = vmatprep.subr.bf16.mxu0 0
    %1342 = vmatpush1.bf16.msra.mxu0 0
    %1343 = vmatprep.subr.bf16.mxu0 0
    %1344 = vmatpush1.bf16.msra.mxu0 0
    %1345 = vmatprep.mubr.bf16.mxu0 0
    %1346 = vmatmul.mubr.bf16.gmra.mrb[0].mxu0 %v1180
    %v1347 = vpop.f32.mrb[0].mxu0
    %v1348 = vadd.f32 %v1176, %v1347
    %v1349 = vpop.f32.mrb[0].mxu0
    %v1350 = vadd.f32 %v1176, %v1349
    %v1351 = vpop.f32.mrb[0].mxu0
    %v1352 = vpop.f32.mrb[0].mxu0
    %1353 = vdwg.mxu0
    %1354 = vmatprep.subr.bf16.mxu0 %v1205
    %1355 = vmatpush1.bf16.msra.mxu0 %v1202
    %1356 = vmatprep.subr.bf16.mxu0 0
    %1357 = vmatpush1.bf16.msra.mxu0 0
    %1358 = vmatprep.subr.bf16.mxu0 0
    %1359 = vmatpush1.bf16.msra.mxu0 0
    %1360 = vmatprep.subr.bf16.mxu0 0
    %1361 = vmatpush1.bf16.msra.mxu0 0
    %1362 = vmatprep.subr.bf16.mxu0 0
    %1363 = vmatpush1.bf16.msra.mxu0 0
    %1364 = vmatprep.subr.bf16.mxu0 0
    %1365 = vmatpush1.bf16.msra.mxu0 0
    %1366 = vmatprep.subr.bf16.mxu0 0
    %1367 = vmatpush1.bf16.msra.mxu0 0
    %1368 = vmatprep.subr.bf16.mxu0 0
    %1369 = vmatpush1.bf16.msra.mxu0 0
    %1370 = vmatprep.subr.bf16.mxu0 0
    %1371 = vmatpush1.bf16.msra.mxu0 0
    %1372 = vmatprep.subr.bf16.mxu0 0
    %1373 = vmatpush1.bf16.msra.mxu0 0
    %1374 = vmatprep.subr.bf16.mxu0 0
    %1375 = vmatpush1.bf16.msra.mxu0 0
    %1376 = vmatprep.subr.bf16.mxu0 0
    %1377 = vmatpush1.bf16.msra.mxu0 0
    %1378 = vmatprep.subr.bf16.mxu0 0
    %1379 = vmatpush1.bf16.msra.mxu0 0
    %1380 = vmatprep.subr.bf16.mxu0 0
    %1381 = vmatpush1.bf16.msra.mxu0 0
    %1382 = vmatprep.subr.bf16.mxu0 0
    %1383 = vmatpush1.bf16.msra.mxu0 0
    %1384 = vmatprep.subr.bf16.mxu0 0
    %1385 = vmatpush1.bf16.msra.mxu0 0
    %1386 = vmatprep.mubr.bf16.mxu0 0
    %1387 = vmatmul.mubr.bf16.gmra.mrb[0].mxu0 %v1180
    %v1388 = vpop.f32.mrb[0].mxu0
    %v1389 = vadd.f32 %v1176, %v1388
    %v1390 = vpop.f32.mrb[0].mxu0
    %v1391 = vadd.f32 %v1176, %v1390
    %v1392 = vpop.f32.mrb[0].mxu0
    %v1393 = vpop.f32.mrb[0].mxu0
    %1394 = vdwg.mxu0
    %1395 = vmatprep.subr.bf16.mxu0 %v1211
    %1396 = vmatpush1.bf16.msra.mxu0 %v1208
    %1397 = vmatprep.subr.bf16.mxu0 0
    %1398 = vmatpush1.bf16.msra.mxu0 0
    %1399 = vmatprep.subr.bf16.mxu0 0
    %1400 = vmatpush1.bf16.msra.mxu0 0
    %1401 = vmatprep.subr.bf16.mxu0 0
    %1402 = vmatpush1.bf16.msra.mxu0 0
    %1403 = vmatprep.subr.bf16.mxu0 0
    %1404 = vmatpush1.bf16.msra.mxu0 0
    %1405 = vmatprep.subr.bf16.mxu0 0
    %1406 = vmatpush1.bf16.msra.mxu0 0
    %1407 = vmatprep.subr.bf16.mxu0 0
    %1408 = vmatpush1.bf16.msra.mxu0 0
    %1409 = vmatprep.subr.bf16.mxu0 0
    %1410 = vmatpush1.bf16.msra.mxu0 0
    %1411 = vmatprep.subr.bf16.mxu0 0
    %1412 = vmatpush1.bf16.msra.mxu0 0
    %1413 = vmatprep.subr.bf16.mxu0 0
    %1414 = vmatpush1.bf16.msra.mxu0 0
    %1415 = vmatprep.subr.bf16.mxu0 0
    %1416 = vmatpush1.bf16.msra.mxu0 0
    %1417 = vmatprep.subr.bf16.mxu0 0
    %1418 = vmatpush1.bf16.msra.mxu0 0
    %1419 = vmatprep.subr.bf16.mxu0 0
    %1420 = vmatpush1.bf16.msra.mxu0 0
    %1421 = vmatprep.subr.bf16.mxu0 0
    %1422 = vmatpush1.bf16.msra.mxu0 0
    %1423 = vmatprep.subr.bf16.mxu0 0
    %1424 = vmatpush1.bf16.msra.mxu0 0
    %1425 = vmatprep.subr.bf16.mxu0 0
    %1426 = vmatpush1.bf16.msra.mxu0 0
    %1427 = vmatprep.mubr.bf16.mxu0 0
    %1428 = vmatmul.mubr.bf16.gmra.mrb[0].mxu0 %v1180
    %v1429 = vpop.f32.mrb[0].mxu0
    %v1430 = vadd.f32 %v1176, %v1429
    %v1431 = vpop.f32.mrb[0].mxu0
    %v1432 = vadd.f32 %v1176, %v1431
    %v1433 = vpop.f32.mrb[0].mxu0
    %v1434 = vpop.f32.mrb[0].mxu0
    %1435 = vdwg.mxu0
    %1436 = vmatprep.subr.bf16.mxu0 %v1217
    %1437 = vmatpush1.bf16.msra.mxu0 %v1214
    %1438 = vmatprep.subr.bf16.mxu0 0
    %1439 = vmatpush1.bf16.msra.mxu0 0
    %1440 = vmatprep.subr.bf16.mxu0 0
    %1441 = vmatpush1.bf16.msra.mxu0 0
    %1442 = vmatprep.subr.bf16.mxu0 0
    %1443 = vmatpush1.bf16.msra.mxu0 0
    %1444 = vmatprep.subr.bf16.mxu0 0
    %1445 = vmatpush1.bf16.msra.mxu0 0
    %1446 = vmatprep.subr.bf16.mxu0 0
    %1447 = vmatpush1.bf16.msra.mxu0 0
    %1448 = vmatprep.subr.bf16.mxu0 0
    %1449 = vmatpush1.bf16.msra.mxu0 0
    %1450 = vmatprep.subr.bf16.mxu0 0
    %1451 = vmatpush1.bf16.msra.mxu0 0
    %1452 = vmatprep.subr.bf16.mxu0 0
    %1453 = vmatpush1.bf16.msra.mxu0 0
    %1454 = vmatprep.subr.bf16.mxu0 0
    %1455 = vmatpush1.bf16.msra.mxu0 0
    %1456 = vmatprep.subr.bf16.mxu0 0
    %1457 = vmatpush1.bf16.msra.mxu0 0
    %1458 = vmatprep.subr.bf16.mxu0 0
    %1459 = vmatpush1.bf16.msra.mxu0 0
    %1460 = vmatprep.subr.bf16.mxu0 0
    %1461 = vmatpush1.bf16.msra.mxu0 0
    %1462 = vmatprep.subr.bf16.mxu0 0
    %1463 = vmatpush1.bf16.msra.mxu0 0
    %1464 = vmatprep.subr.bf16.mxu0 0
    %1465 = vmatpush1.bf16.msra.mxu0 0
    %1466 = vmatprep.subr.bf16.mxu0 0
    %1467 = vmatpush1.bf16.msra.mxu0 0
    %1468 = vmatprep.mubr.bf16.mxu0 0
    %1469 = vmatmul.mubr.bf16.gmra.mrb[0].mxu0 %v1180
    %v1470 = vpop.f32.mrb[0].mxu0
    %v1471 = vadd.f32 %v1176, %v1470
    %v1472 = vpop.f32.mrb[0].mxu0
    %v1473 = vadd.f32 %v1176, %v1472
    %v1474 = vpop.f32.mrb[0].mxu0
    %v1475 = vpop.f32.mrb[0].mxu0
    %1476 = vdwg.mxu0
    %1477 = vmatprep.subr.bf16.mxu0 %v1223
    %1478 = vmatpush1.bf16.msra.mxu0 %v1220
    %1479 = vmatprep.subr.bf16.mxu0 0
    %1480 = vmatpush1.bf16.msra.mxu0 0
    %1481 = vmatprep.subr.bf16.mxu0 0
    %1482 = vmatpush1.bf16.msra.mxu0 0
    %1483 = vmatprep.subr.bf16.mxu0 0
    %1484 = vmatpush1.bf16.msra.mxu0 0
    %1485 = vmatprep.subr.bf16.mxu0 0
    %1486 = vmatpush1.bf16.msra.mxu0 0
    %1487 = vmatprep.subr.bf16.mxu0 0
    %1488 = vmatpush1.bf16.msra.mxu0 0
    %1489 = vmatprep.subr.bf16.mxu0 0
    %1490 = vmatpush1.bf16.msra.mxu0 0
    %1491 = vmatprep.subr.bf16.mxu0 0
    %1492 = vmatpush1.bf16.msra.mxu0 0
    %1493 = vmatprep.subr.bf16.mxu0 0
    %1494 = vmatpush1.bf16.msra.mxu0 0
    %1495 = vmatprep.subr.bf16.mxu0 0
    %1496 = vmatpush1.bf16.msra.mxu0 0
    %1497 = vmatprep.subr.bf16.mxu0 0
    %1498 = vmatpush1.bf16.msra.mxu0 0
    %1499 = vmatprep.subr.bf16.mxu0 0
    %1500 = vmatpush1.bf16.msra.mxu0 0
    %1501 = vmatprep.subr.bf16.mxu0 0
    %1502 = vmatpush1.bf16.msra.mxu0 0
    %1503 = vmatprep.subr.bf16.mxu0 0
    %1504 = vmatpush1.bf16.msra.mxu0 0
    %1505 = vmatprep.subr.bf16.mxu0 0
    %1506 = vmatpush1.bf16.msra.mxu0 0
    %1507 = vmatprep.subr.bf16.mxu0 0
    %1508 = vmatpush1.bf16.msra.mxu0 0
    %1509 = vmatprep.mubr.bf16.mxu0 0
    %1510 = vmatmul.mubr.bf16.gmra.mrb[0].mxu0 %v1180
    %v1511 = vpop.f32.mrb[0].mxu0
    %v1512 = vadd.f32 %v1176, %v1511
    %v1513 = vpop.f32.mrb[0].mxu0
    %v1514 = vadd.f32 %v1176, %v1513
    %v1515 = vpop.f32.mrb[0].mxu0
    %v1516 = vpop.f32.mrb[0].mxu0
    %1517 = vdwg.mxu0
    %1518 = vmatprep.subr.bf16.mxu0 %v1229
    %1519 = vmatpush1.bf16.msra.mxu0 %v1226
    %1520 = vmatprep.subr.bf16.mxu0 0
    %1521 = vmatpush1.bf16.msra.mxu0 0
    %1522 = vmatprep.subr.bf16.mxu0 0
    %1523 = vmatpush1.bf16.msra.mxu0 0
    %1524 = vmatprep.subr.bf16.mxu0 0
    %1525 = vmatpush1.bf16.msra.mxu0 0
    %1526 = vmatprep.subr.bf16.mxu0 0
    %1527 = vmatpush1.bf16.msra.mxu0 0
    %1528 = vmatprep.subr.bf16.mxu0 0
    %1529 = vmatpush1.bf16.msra.mxu0 0
    %1530 = vmatprep.subr.bf16.mxu0 0
    %1531 = vmatpush1.bf16.msra.mxu0 0
    %1532 = vmatprep.subr.bf16.mxu0 0
    %1533 = vmatpush1.bf16.msra.mxu0 0
    %1534 = vmatprep.subr.bf16.mxu0 0
    %1535 = vmatpush1.bf16.msra.mxu0 0
    %1536 = vmatprep.subr.bf16.mxu0 0
    %1537 = vmatpush1.bf16.msra.mxu0 0
    %1538 = vmatprep.subr.bf16.mxu0 0
    %1539 = vmatpush1.bf16.msra.mxu0 0
    %1540 = vmatprep.subr.bf16.mxu0 0
    %1541 = vmatpush1.bf16.msra.mxu0 0
    %1542 = vmatprep.subr.bf16.mxu0 0
    %1543 = vmatpush1.bf16.msra.mxu0 0
    %1544 = vmatprep.subr.bf16.mxu0 0
    %1545 = vmatpush1.bf16.msra.mxu0 0
    %1546 = vmatprep.subr.bf16.mxu0 0
    %1547 = vmatpush1.bf16.msra.mxu0 0
    %1548 = vmatprep.subr.bf16.mxu0 0
    %1549 = vmatpush1.bf16.msra.mxu0 0
    %1550 = vmatprep.mubr.bf16.mxu0 0
    %1551 = vmatmul.mubr.bf16.gmra.mrb[0].mxu0 %v1180
    %v1552 = vpop.f32.mrb[0].mxu0
    %v1553 = vadd.f32 %v1176, %v1552
    %v1554 = vpop.f32.mrb[0].mxu0
    %v1555 = vadd.f32 %v1176, %v1554
    %v1556 = vpop.f32.mrb[0].mxu0
    %v1557 = vpop.f32.mrb[0].mxu0
    %1558 = vdwg.mxu0
    %v1559 = vmax.f32 %v1266, 0.0
    %v1560 = vmax.f32 %v1268, 0.0
    %v1561 = vmax.f32 %v1307, 0.0
    %v1562 = vmax.f32 %v1309, 0.0
    %v1563 = vmax.f32 %v1348, 0.0
    %v1564 = vmax.f32 %v1350, 0.0
    %v1565 = vmax.f32 %v1389, 0.0
    %v1566 = vmax.f32 %v1391, 0.0
    %v1567 = vmax.f32 %v1430, 0.0
    %v1568 = vmax.f32 %v1432, 0.0
    %v1569 = vmax.f32 %v1471, 0.0
    %v1570 = vmax.f32 %v1473, 0.0
    %v1571 = vmax.f32 %v1512, 0.0
    %v1572 = vmax.f32 %v1514, 0.0
    %v1573 = vmax.f32 %v1553, 0.0
    %v1574 = vmax.f32 %v1555, 0.0
    %v1575 = vpack.c.bf16 %v1559, %v1559
    %v1576 = vpack.c.bf16 %v1560, %v1560
    %v1577 = vpack.c.bf16 %v1561, %v1561
    %v1578 = vpack.c.bf16 %v1562, %v1562
    %v1579 = vpack.c.bf16 %v1563, %v1563
    %v1580 = vpack.c.bf16 %v1564, %v1564
    %v1581 = vpack.c.bf16 %v1565, %v1565
    %v1582 = vpack.c.bf16 %v1566, %v1566
    %v1583 = vpack.c.bf16 %v1567, %v1567
    %v1584 = vpack.c.bf16 %v1568, %v1568
    %v1585 = vpack.c.bf16 %v1569, %v1569
    %v1586 = vpack.c.bf16 %v1570, %v1570
    %v1587 = vpack.c.bf16 %v1571, %v1571
    %v1588 = vpack.c.bf16 %v1572, %v1572
    %v1589 = vpack.c.bf16 %v1573, %v1573
    %v1590 = vpack.c.bf16 %v1574, %v1574
    %1592 = vset.pattern.permute.xlu0 0
    %1593 = vperm.xlu0 %1592, %v35
    %v1594 = vpop.permute.xlu0 %1593
    %v1597 = vsel %vm1178, %v32, 0
    %v1600 = vsel %vm1182, %v1575, 0
    %v1603 = vsel %vm1182, %v1576, 0
    %v1606 = vsel %vm1182, %v1577, 0
    %v1609 = vsel %vm1182, %v1578, 0
    %v1612 = vsel %vm1182, %v1579, 0
    %v1615 = vsel %vm1182, %v1580, 0
    %v1618 = vsel %vm1182, %v1581, 0
    %v1621 = vsel %vm1182, %v1582, 0
    %v1624 = vsel %vm1182, %v1583, 0
    %v1627 = vsel %vm1182, %v1584, 0
    %v1630 = vsel %vm1182, %v1585, 0
    %v1633 = vsel %vm1182, %v1586, 0
    %v1636 = vsel %vm1182, %v1587, 0
    %v1639 = vsel %vm1182, %v1588, 0
    %v1642 = vsel %vm1182, %v1589, 0
    %v1645 = vsel %vm1182, %v1590, 0
    %1647 = vmatprep.subr.bf16.mxu0 %v1603
    %1648 = vmatpush1.bf16.msra.mxu0 %v1600
    %1649 = vmatprep.subr.bf16.mxu0 0
    %1650 = vmatpush1.bf16.msra.mxu0 0
    %1651 = vmatprep.subr.bf16.mxu0 0
    %1652 = vmatpush1.bf16.msra.mxu0 0
    %1653 = vmatprep.subr.bf16.mxu0 0
    %1654 = vmatpush1.bf16.msra.mxu0 0
    %1655 = vmatprep.subr.bf16.mxu0 0
    %1656 = vmatpush1.bf16.msra.mxu0 0
    %1657 = vmatprep.subr.bf16.mxu0 0
    %1658 = vmatpush1.bf16.msra.mxu0 0
    %1659 = vmatprep.subr.bf16.mxu0 0
    %1660 = vmatpush1.bf16.msra.mxu0 0
    %1661 = vmatprep.subr.bf16.mxu0 0
    %1662 = vmatpush1.bf16.msra.mxu0 0
    %1663 = vmatprep.subr.bf16.mxu0 0
    %1664 = vmatpush1.bf16.msra.mxu0 0
    %1665 = vmatprep.subr.bf16.mxu0 0
    %1666 = vmatpush1.bf16.msra.mxu0 0
    %1667 = vmatprep.subr.bf16.mxu0 0
    %1668 = vmatpush1.bf16.msra.mxu0 0
    %1669 = vmatprep.subr.bf16.mxu0 0
    %1670 = vmatpush1.bf16.msra.mxu0 0
    %1671 = vmatprep.subr.bf16.mxu0 0
    %1672 = vmatpush1.bf16.msra.mxu0 0
    %1673 = vmatprep.subr.bf16.mxu0 0
    %1674 = vmatpush1.bf16.msra.mxu0 0
    %1675 = vmatprep.subr.bf16.mxu0 0
    %1676 = vmatpush1.bf16.msra.mxu0 0
    %1677 = vmatprep.subr.bf16.mxu0 0
    %1678 = vmatpush1.bf16.msra.mxu0 0
    %1679 = vmatprep.mubr.bf16.mxu0 0
    %1680 = vmatmul.mubr.bf16.gmra.mrb[0].mxu0 %v1597
    %v1681 = vpop.f32.mrb[0].mxu0
    %v1682 = vadd.f32 %v1594, %v1681
    %v1683 = vpop.f32.mrb[0].mxu0
    %v1684 = vadd.f32 %v1594, %v1683
    %v1685 = vpop.f32.mrb[0].mxu0
    %v1686 = vpop.f32.mrb[0].mxu0
    %1687 = vdwg.mxu0
    %1688 = vmatprep.subr.bf16.mxu0 %v1609
    %1689 = vmatpush1.bf16.msra.mxu0 %v1606
    %1690 = vmatprep.subr.bf16.mxu0 0
    %1691 = vmatpush1.bf16.msra.mxu0 0
    %1692 = vmatprep.subr.bf16.mxu0 0
    %1693 = vmatpush1.bf16.msra.mxu0 0
    %1694 = vmatprep.subr.bf16.mxu0 0
    %1695 = vmatpush1.bf16.msra.mxu0 0
    %1696 = vmatprep.subr.bf16.mxu0 0
    %1697 = vmatpush1.bf16.msra.mxu0 0
    %1698 = vmatprep.subr.bf16.mxu0 0
    %1699 = vmatpush1.bf16.msra.mxu0 0
    %1700 = vmatprep.subr.bf16.mxu0 0
    %1701 = vmatpush1.bf16.msra.mxu0 0
    %1702 = vmatprep.subr.bf16.mxu0 0
    %1703 = vmatpush1.bf16.msra.mxu0 0
    %1704 = vmatprep.subr.bf16.mxu0 0
    %1705 = vmatpush1.bf16.msra.mxu0 0
    %1706 = vmatprep.subr.bf16.mxu0 0
    %1707 = vmatpush1.bf16.msra.mxu0 0
    %1708 = vmatprep.subr.bf16.mxu0 0
    %1709 = vmatpush1.bf16.msra.mxu0 0
    %1710 = vmatprep.subr.bf16.mxu0 0
    %1711 = vmatpush1.bf16.msra.mxu0 0
    %1712 = vmatprep.subr.bf16.mxu0 0
    %1713 = vmatpush1.bf16.msra.mxu0 0
    %1714 = vmatprep.subr.bf16.mxu0 0
    %1715 = vmatpush1.bf16.msra.mxu0 0
    %1716 = vmatprep.subr.bf16.mxu0 0
    %1717 = vmatpush1.bf16.msra.mxu0 0
    %1718 = vmatprep.subr.bf16.mxu0 0
    %1719 = vmatpush1.bf16.msra.mxu0 0
    %1720 = vmatprep.mubr.bf16.mxu0 0
    %1721 = vmatmul.mubr.bf16.gmra.mrb[0].mxu0 %v1597
    %v1722 = vpop.f32.mrb[0].mxu0
    %v1723 = vadd.f32 %v1594, %v1722
    %v1724 = vpop.f32.mrb[0].mxu0
    %v1725 = vadd.f32 %v1594, %v1724
    %v1726 = vpop.f32.mrb[0].mxu0
    %v1727 = vpop.f32.mrb[0].mxu0
    %1728 = vdwg.mxu0
    %1729 = vmatprep.subr.bf16.mxu0 %v1615
    %1730 = vmatpush1.bf16.msra.mxu0 %v1612
    %1731 = vmatprep.subr.bf16.mxu0 0
    %1732 = vmatpush1.bf16.msra.mxu0 0
    %1733 = vmatprep.subr.bf16.mxu0 0
    %1734 = vmatpush1.bf16.msra.mxu0 0
    %1735 = vmatprep.subr.bf16.mxu0 0
    %1736 = vmatpush1.bf16.msra.mxu0 0
    %1737 = vmatprep.subr.bf16.mxu0 0
    %1738 = vmatpush1.bf16.msra.mxu0 0
    %1739 = vmatprep.subr.bf16.mxu0 0
    %1740 = vmatpush1.bf16.msra.mxu0 0
    %1741 = vmatprep.subr.bf16.mxu0 0
    %1742 = vmatpush1.bf16.msra.mxu0 0
    %1743 = vmatprep.subr.bf16.mxu0 0
    %1744 = vmatpush1.bf16.msra.mxu0 0
    %1745 = vmatprep.subr.bf16.mxu0 0
    %1746 = vmatpush1.bf16.msra.mxu0 0
    %1747 = vmatprep.subr.bf16.mxu0 0
    %1748 = vmatpush1.bf16.msra.mxu0 0
    %1749 = vmatprep.subr.bf16.mxu0 0
    %1750 = vmatpush1.bf16.msra.mxu0 0
    %1751 = vmatprep.subr.bf16.mxu0 0
    %1752 = vmatpush1.bf16.msra.mxu0 0
    %1753 = vmatprep.subr.bf16.mxu0 0
    %1754 = vmatpush1.bf16.msra.mxu0 0
    %1755 = vmatprep.subr.bf16.mxu0 0
    %1756 = vmatpush1.bf16.msra.mxu0 0
    %1757 = vmatprep.subr.bf16.mxu0 0
    %1758 = vmatpush1.bf16.msra.mxu0 0
    %1759 = vmatprep.subr.bf16.mxu0 0
    %1760 = vmatpush1.bf16.msra.mxu0 0
    %1761 = vmatprep.mubr.bf16.mxu0 0
    %1762 = vmatmul.mubr.bf16.gmra.mrb[0].mxu0 %v1597
    %v1763 = vpop.f32.mrb[0].mxu0
    %v1764 = vadd.f32 %v1594, %v1763
    %v1765 = vpop.f32.mrb[0].mxu0
    %v1766 = vadd.f32 %v1594, %v1765
    %v1767 = vpop.f32.mrb[0].mxu0
    %v1768 = vpop.f32.mrb[0].mxu0
    %1769 = vdwg.mxu0
    %1770 = vmatprep.subr.bf16.mxu0 %v1621
    %1771 = vmatpush1.bf16.msra.mxu0 %v1618
    %1772 = vmatprep.subr.bf16.mxu0 0
    %1773 = vmatpush1.bf16.msra.mxu0 0
    %1774 = vmatprep.subr.bf16.mxu0 0
    %1775 = vmatpush1.bf16.msra.mxu0 0
    %1776 = vmatprep.subr.bf16.mxu0 0
    %1777 = vmatpush1.bf16.msra.mxu0 0
    %1778 = vmatprep.subr.bf16.mxu0 0
    %1779 = vmatpush1.bf16.msra.mxu0 0
    %1780 = vmatprep.subr.bf16.mxu0 0
    %1781 = vmatpush1.bf16.msra.mxu0 0
    %1782 = vmatprep.subr.bf16.mxu0 0
    %1783 = vmatpush1.bf16.msra.mxu0 0
    %1784 = vmatprep.subr.bf16.mxu0 0
    %1785 = vmatpush1.bf16.msra.mxu0 0
    %1786 = vmatprep.subr.bf16.mxu0 0
    %1787 = vmatpush1.bf16.msra.mxu0 0
    %1788 = vmatprep.subr.bf16.mxu0 0
    %1789 = vmatpush1.bf16.msra.mxu0 0
    %1790 = vmatprep.subr.bf16.mxu0 0
    %1791 = vmatpush1.bf16.msra.mxu0 0
    %1792 = vmatprep.subr.bf16.mxu0 0
    %1793 = vmatpush1.bf16.msra.mxu0 0
    %1794 = vmatprep.subr.bf16.mxu0 0
    %1795 = vmatpush1.bf16.msra.mxu0 0
    %1796 = vmatprep.subr.bf16.mxu0 0
    %1797 = vmatpush1.bf16.msra.mxu0 0
    %1798 = vmatprep.subr.bf16.mxu0 0
    %1799 = vmatpush1.bf16.msra.mxu0 0
    %1800 = vmatprep.subr.bf16.mxu0 0
    %1801 = vmatpush1.bf16.msra.mxu0 0
    %1802 = vmatprep.mubr.bf16.mxu0 0
    %1803 = vmatmul.mubr.bf16.gmra.mrb[0].mxu0 %v1597
    %v1804 = vpop.f32.mrb[0].mxu0
    %v1805 = vadd.f32 %v1594, %v1804
    %v1806 = vpop.f32.mrb[0].mxu0
    %v1807 = vadd.f32 %v1594, %v1806
    %v1808 = vpop.f32.mrb[0].mxu0
    %v1809 = vpop.f32.mrb[0].mxu0
    %1810 = vdwg.mxu0
    %1811 = vmatprep.subr.bf16.mxu0 %v1627
    %1812 = vmatpush1.bf16.msra.mxu0 %v1624
    %1813 = vmatprep.subr.bf16.mxu0 0
    %1814 = vmatpush1.bf16.msra.mxu0 0
    %1815 = vmatprep.subr.bf16.mxu0 0
    %1816 = vmatpush1.bf16.msra.mxu0 0
    %1817 = vmatprep.subr.bf16.mxu0 0
    %1818 = vmatpush1.bf16.msra.mxu0 0
    %1819 = vmatprep.subr.bf16.mxu0 0
    %1820 = vmatpush1.bf16.msra.mxu0 0
    %1821 = vmatprep.subr.bf16.mxu0 0
    %1822 = vmatpush1.bf16.msra.mxu0 0
    %1823 = vmatprep.subr.bf16.mxu0 0
    %1824 = vmatpush1.bf16.msra.mxu0 0
    %1825 = vmatprep.subr.bf16.mxu0 0
    %1826 = vmatpush1.bf16.msra.mxu0 0
    %1827 = vmatprep.subr.bf16.mxu0 0
    %1828 = vmatpush1.bf16.msra.mxu0 0
    %1829 = vmatprep.subr.bf16.mxu0 0
    %1830 = vmatpush1.bf16.msra.mxu0 0
    %1831 = vmatprep.subr.bf16.mxu0 0
    %1832 = vmatpush1.bf16.msra.mxu0 0
    %1833 = vmatprep.subr.bf16.mxu0 0
    %1834 = vmatpush1.bf16.msra.mxu0 0
    %1835 = vmatprep.subr.bf16.mxu0 0
    %1836 = vmatpush1.bf16.msra.mxu0 0
    %1837 = vmatprep.subr.bf16.mxu0 0
    %1838 = vmatpush1.bf16.msra.mxu0 0
    %1839 = vmatprep.subr.bf16.mxu0 0
    %1840 = vmatpush1.bf16.msra.mxu0 0
    %1841 = vmatprep.subr.bf16.mxu0 0
    %1842 = vmatpush1.bf16.msra.mxu0 0
    %1843 = vmatprep.mubr.bf16.mxu0 0
    %1844 = vmatmul.mubr.bf16.gmra.mrb[0].mxu0 %v1597
    %v1845 = vpop.f32.mrb[0].mxu0
    %v1846 = vadd.f32 %v1594, %v1845
    %v1847 = vpop.f32.mrb[0].mxu0
    %v1848 = vadd.f32 %v1594, %v1847
    %v1849 = vpop.f32.mrb[0].mxu0
    %v1850 = vpop.f32.mrb[0].mxu0
    %1851 = vdwg.mxu0
    %1852 = vmatprep.subr.bf16.mxu0 %v1633
    %1853 = vmatpush1.bf16.msra.mxu0 %v1630
    %1854 = vmatprep.subr.bf16.mxu0 0
    %1855 = vmatpush1.bf16.msra.mxu0 0
    %1856 = vmatprep.subr.bf16.mxu0 0
    %1857 = vmatpush1.bf16.msra.mxu0 0
    %1858 = vmatprep.subr.bf16.mxu0 0
    %1859 = vmatpush1.bf16.msra.mxu0 0
    %1860 = vmatprep.subr.bf16.mxu0 0
    %1861 = vmatpush1.bf16.msra.mxu0 0
    %1862 = vmatprep.subr.bf16.mxu0 0
    %1863 = vmatpush1.bf16.msra.mxu0 0
    %1864 = vmatprep.subr.bf16.mxu0 0
    %1865 = vmatpush1.bf16.msra.mxu0 0
    %1866 = vmatprep.subr.bf16.mxu0 0
    %1867 = vmatpush1.bf16.msra.mxu0 0
    %1868 = vmatprep.subr.bf16.mxu0 0
    %1869 = vmatpush1.bf16.msra.mxu0 0
    %1870 = vmatprep.subr.bf16.mxu0 0
    %1871 = vmatpush1.bf16.msra.mxu0 0
    %1872 = vmatprep.subr.bf16.mxu0 0
    %1873 = vmatpush1.bf16.msra.mxu0 0
    %1874 = vmatprep.subr.bf16.mxu0 0
    %1875 = vmatpush1.bf16.msra.mxu0 0
    %1876 = vmatprep.subr.bf16.mxu0 0
    %1877 = vmatpush1.bf16.msra.mxu0 0
    %1878 = vmatprep.subr.bf16.mxu0 0
    %1879 = vmatpush1.bf16.msra.mxu0 0
    %1880 = vmatprep.subr.bf16.mxu0 0
    %1881 = vmatpush1.bf16.msra.mxu0 0
    %1882 = vmatprep.subr.bf16.mxu0 0
    %1883 = vmatpush1.bf16.msra.mxu0 0
    %1884 = vmatprep.mubr.bf16.mxu0 0
    %1885 = vmatmul.mubr.bf16.gmra.mrb[0].mxu0 %v1597
    %v1886 = vpop.f32.mrb[0].mxu0
    %v1887 = vadd.f32 %v1594, %v1886
    %v1888 = vpop.f32.mrb[0].mxu0
    %v1889 = vadd.f32 %v1594, %v1888
    %v1890 = vpop.f32.mrb[0].mxu0
    %v1891 = vpop.f32.mrb[0].mxu0
    %1892 = vdwg.mxu0
    %1893 = vmatprep.subr.bf16.mxu0 %v1639
    %1894 = vmatpush1.bf16.msra.mxu0 %v1636
    %1895 = vmatprep.subr.bf16.mxu0 0
    %1896 = vmatpush1.bf16.msra.mxu0 0
    %1897 = vmatprep.subr.bf16.mxu0 0
    %1898 = vmatpush1.bf16.msra.mxu0 0
    %1899 = vmatprep.subr.bf16.mxu0 0
    %1900 = vmatpush1.bf16.msra.mxu0 0
    %1901 = vmatprep.subr.bf16.mxu0 0
    %1902 = vmatpush1.bf16.msra.mxu0 0
    %1903 = vmatprep.subr.bf16.mxu0 0
    %1904 = vmatpush1.bf16.msra.mxu0 0
    %1905 = vmatprep.subr.bf16.mxu0 0
    %1906 = vmatpush1.bf16.msra.mxu0 0
    %1907 = vmatprep.subr.bf16.mxu0 0
    %1908 = vmatpush1.bf16.msra.mxu0 0
    %1909 = vmatprep.subr.bf16.mxu0 0
    %1910 = vmatpush1.bf16.msra.mxu0 0
    %1911 = vmatprep.subr.bf16.mxu0 0
    %1912 = vmatpush1.bf16.msra.mxu0 0
    %1913 = vmatprep.subr.bf16.mxu0 0
    %1914 = vmatpush1.bf16.msra.mxu0 0
    %1915 = vmatprep.subr.bf16.mxu0 0
    %1916 = vmatpush1.bf16.msra.mxu0 0
    %1917 = vmatprep.subr.bf16.mxu0 0
    %1918 = vmatpush1.bf16.msra.mxu0 0
    %1919 = vmatprep.subr.bf16.mxu0 0
    %1920 = vmatpush1.bf16.msra.mxu0 0
    %1921 = vmatprep.subr.bf16.mxu0 0
    %1922 = vmatpush1.bf16.msra.mxu0 0
    %1923 = vmatprep.subr.bf16.mxu0 0
    %1924 = vmatpush1.bf16.msra.mxu0 0
    %1925 = vmatprep.mubr.bf16.mxu0 0
    %1926 = vmatmul.mubr.bf16.gmra.mrb[0].mxu0 %v1597
    %v1927 = vpop.f32.mrb[0].mxu0
    %v1928 = vadd.f32 %v1594, %v1927
    %v1929 = vpop.f32.mrb[0].mxu0
    %v1930 = vadd.f32 %v1594, %v1929
    %v1931 = vpop.f32.mrb[0].mxu0
    %v1932 = vpop.f32.mrb[0].mxu0
    %1933 = vdwg.mxu0
    %1934 = vmatprep.subr.bf16.mxu0 %v1645
    %1935 = vmatpush1.bf16.msra.mxu0 %v1642
    %1936 = vmatprep.subr.bf16.mxu0 0
    %1937 = vmatpush1.bf16.msra.mxu0 0
    %1938 = vmatprep.subr.bf16.mxu0 0
    %1939 = vmatpush1.bf16.msra.mxu0 0
    %1940 = vmatprep.subr.bf16.mxu0 0
    %1941 = vmatpush1.bf16.msra.mxu0 0
    %1942 = vmatprep.subr.bf16.mxu0 0
    %1943 = vmatpush1.bf16.msra.mxu0 0
    %1944 = vmatprep.subr.bf16.mxu0 0
    %1945 = vmatpush1.bf16.msra.mxu0 0
    %1946 = vmatprep.subr.bf16.mxu0 0
    %1947 = vmatpush1.bf16.msra.mxu0 0
    %1948 = vmatprep.subr.bf16.mxu0 0
    %1949 = vmatpush1.bf16.msra.mxu0 0
    %1950 = vmatprep.subr.bf16.mxu0 0
    %1951 = vmatpush1.bf16.msra.mxu0 0
    %1952 = vmatprep.subr.bf16.mxu0 0
    %1953 = vmatpush1.bf16.msra.mxu0 0
    %1954 = vmatprep.subr.bf16.mxu0 0
    %1955 = vmatpush1.bf16.msra.mxu0 0
    %1956 = vmatprep.subr.bf16.mxu0 0
    %1957 = vmatpush1.bf16.msra.mxu0 0
    %1958 = vmatprep.subr.bf16.mxu0 0
    %1959 = vmatpush1.bf16.msra.mxu0 0
    %1960 = vmatprep.subr.bf16.mxu0 0
    %1961 = vmatpush1.bf16.msra.mxu0 0
    %1962 = vmatprep.subr.bf16.mxu0 0
    %1963 = vmatpush1.bf16.msra.mxu0 0
    %1964 = vmatprep.subr.bf16.mxu0 0
    %1965 = vmatpush1.bf16.msra.mxu0 0
    %1966 = vmatprep.mubr.bf16.mxu0 0
    %1967 = vmatmul.mubr.bf16.gmra.mrb[0].mxu0 %v1597
    %v1968 = vpop.f32.mrb[0].mxu0
    %v1969 = vadd.f32 %v1594, %v1968
    %v1970 = vpop.f32.mrb[0].mxu0
    %v1971 = vadd.f32 %v1594, %v1970
    %v1972 = vpop.f32.mrb[0].mxu0
    %v1973 = vpop.f32.mrb[0].mxu0
    %1974 = vdwg.mxu0
    %1975 = vst [vmem:[#allocation2] sm:$0xff] %v1682
    %1976 = vst [vmem:[#allocation2 + $0x8] sm:$0xff] %v1684
    %1977 = vst [vmem:[#allocation2 + $0x10] sm:$0xff] %v1723
    %1978 = vst [vmem:[#allocation2 + $0x18] sm:$0xff] %v1725
    %1979 = vst [vmem:[#allocation2 + $0x20] sm:$0xff] %v1764
    %1980 = vst [vmem:[#allocation2 + $0x28] sm:$0xff] %v1766
    %1981 = vst [vmem:[#allocation2 + $0x30] sm:$0xff] %v1805
    %1982 = vst [vmem:[#allocation2 + $0x38] sm:$0xff] %v1807
    %1983 = vst [vmem:[#allocation2 + $0x40] sm:$0xff] %v1846
    %1984 = vst [vmem:[#allocation2 + $0x48] sm:$0xff] %v1848
    %1985 = vst [vmem:[#allocation2 + $0x50] sm:$0xff] %v1887
    %1986 = vst [vmem:[#allocation2 + $0x58] sm:$0xff] %v1889
    %1987 = vst [vmem:[#allocation2 + $0x60] sm:$0xff] %v1928
    %1988 = vst [vmem:[#allocation2 + $0x68] sm:$0xff] %v1930
    %1989 = vst [vmem:[#allocation2 + $0x70] sm:$0xff] %v1969
    %1990 = vst [vmem:[#allocation2 + $0x78] sm:$0xff] %v1971
    // Predicated region
    $region30: #{simple_fc_net.1} parent=1 // pred_check
      _
    $region31: #{simple_fc_net.1} parent=1 // pred_check_branch
      %1992 = sbr.rel (0) target = $region33
    $region32: #{simple_fc_net.1} parent=1 // pred_region
      // Predicated region
      $region34: #{simple_fc_net.1} parent=32 // pred_check
        _
      $region35: #{simple_fc_net.1} parent=32 // pred_check_branch
        %1994 = sbr.rel (0) target = $region37
      $region36: #{simple_fc_net.1} parent=32 // pred_region
        // Predicated region
        $region38: #{simple_fc_net.1} parent=36 // pred_check
          _
        $region39: #{simple_fc_net.1} parent=36 // pred_check_branch
          %1996 = sbr.rel (0) target = $region41
        $region40: #{simple_fc_net.1} parent=36 // pred_region
          // Predicated region
          $region53: #{simple_fc_net.1} parent=40 // pred_check
            _
          $region54: #{simple_fc_net.1} parent=40 // pred_check_branch
            %2011 = sbr.rel (0) target = $region56
          $region55: #{simple_fc_net.1} parent=40 // pred_region
            loop: start=0, step=1, limit=1
            $region57: #{simple_fc_net.1} parent=55 // loop_pre_header
              _
            $region58: #{simple_fc_net.1} parent=55 // loop_header
              %s2013 = sphi 0, %s2017
              %p2014 = scmp.ge.s32.totalorder %s2013, 1
              %s2018 = sphi [#allocation2], [#allocation2]
              %s2019 = sphi %s7, %s7
            $region59: #{simple_fc_net.1} parent=55 // loop_header_branch
              %2016 = sbr.rel (%p2014) target = $region63
            $region60: #{simple_fc_net.1} parent=55 // loop_body
              %v2020 = vld [vmem:[%s2018] sm:$0xff]
              %2021 = vst [vmem:[%s2019] sm:$0xff] %v2020
            $region61: #{simple_fc_net.1} parent=55 // loop_footer
              %s2017 = sadd.s32 1, %s2013
            $region62: #{simple_fc_net.1} parent=55 // loop_footer_branch
              %2012 = sbr.rel target = $region58
            $region63: #{simple_fc_net.1} parent=55 // loop_exit
              _
          $region56: #{simple_fc_net.1} parent=40 // pred_fallthru
            _
          // Predicated region
          $region64: #{simple_fc_net.1} parent=40 // pred_check
            _
          $region65: #{simple_fc_net.1} parent=40 // pred_check_branch
            %2023 = sbr.rel target = $region67
          $region66: #{simple_fc_net.1} parent=40 // pred_region
            _
          $region67: #{simple_fc_net.1} parent=40 // pred_fallthru
            _
        $region41: #{simple_fc_net.1} parent=36 // pred_fallthru
          _
        // Predicated region
        $region42: #{simple_fc_net.1} parent=36 // pred_check
          _
        $region43: #{simple_fc_net.1} parent=36 // pred_check_branch
          %1998 = sbr.rel target = $region45
        $region44: #{simple_fc_net.1} parent=36 // pred_region
          loop: start=0, step=1, limit=1
          $region46: #{simple_fc_net.1} parent=44 // loop_pre_header
            _
          $region47: #{simple_fc_net.1} parent=44 // loop_header
            %s2001 = sphi 0, %s2005
            %p2002 = scmp.ge.s32.totalorder %s2001, 1
            %s2006 = sphi [#allocation2], [#allocation2]
            %s2007 = sphi %s7, %s7
          $region48: #{simple_fc_net.1} parent=44 // loop_header_branch
            %2004 = sbr.rel (%p2002) target = $region52
          $region49: #{simple_fc_net.1} parent=44 // loop_body
            %v2008 = vld [vmem:[%s2006] sm:$0xff]
            %2009 = vst [vmem:[%s2007] sm:$0xff] %v2008
          $region50: #{simple_fc_net.1} parent=44 // loop_footer
            %s2005 = sadd.s32 1, %s2001
          $region51: #{simple_fc_net.1} parent=44 // loop_footer_branch
            %2000 = sbr.rel target = $region47
          $region52: #{simple_fc_net.1} parent=44 // loop_exit
            _
        $region45: #{simple_fc_net.1} parent=36 // pred_fallthru
          _
      $region37: #{simple_fc_net.1} parent=32 // pred_fallthru
        _
      %2024 = vnop
    $region33: #{simple_fc_net.1} parent=1 // pred_fallthru
      _
    // Predicated region
    $region68: #{simple_fc_net.1} parent=1 // pred_check
      _
    $region69: #{simple_fc_net.1} parent=1 // pred_check_branch
      %2026 = sbr.rel (0) target = $region71
    $region70: #{simple_fc_net.1} parent=1 // pred_region
      _
    $region71: #{simple_fc_net.1} parent=1 // pred_fallthru
      _

</llo_original>
